<compile_context>
chip_gen: v7x
topology: tpu7x:2x2x1
jax: 0.10.0
libtpu: 0.0.40
codegen_flags: <defaults>
</compile_context>

<pallas_src>
import functools

import jax
import jax.numpy as jnp
from jax.experimental import pallas as pl
from jax.experimental.pallas import tpu as pltpu

N_GRAPHEME = 168
N_VOWEL = 11
N_CONSONANT = 7
N_TOTAL = N_GRAPHEME + N_VOWEL + N_CONSONANT   # 186
N_PAD = 256                                    # lane-dense padded head width
LABEL_LANES = 128                              # one vreg of packed labels

_HEADS = (
    (0, N_GRAPHEME),
    (N_GRAPHEME, N_VOWEL),
    (N_GRAPHEME + N_VOWEL, N_CONSONANT),
)

# K slab fully resident when F is at most this (weight slab ~4 MiB bf16).
_SINGLE_SHOT_F = 8192
_TK_LARGE = 2048


def _round_up(v, m):
    return (v + m - 1) // m * m


def _choose_tiling(f_dim):
    """Returns (tk, f_pad) for the contraction dim."""
    if f_dim <= _SINGLE_SHOT_F:
        tk = _round_up(f_dim, 128)
        return tk, tk                    # grid of 1, whole K in one step
    tk = _TK_LARGE
    return tk, _round_up(f_dim, tk)


# --------------------------------------------------------------------------
# Parameter prep (call ONCE at parameter load; hoisted out of the step jit)
# --------------------------------------------------------------------------
def prepare_predictor_params(w, b):
    """w: [F, 186], b: [1, 186] (or [186]) -> padded bf16 / f32 slabs."""
    f_dim = w.shape[0]
    _, f_pad = _choose_tiling(f_dim)
    w_p = jnp.zeros((f_pad, N_PAD), jnp.bfloat16).at[:f_dim, :N_TOTAL].set(
        w.astype(jnp.bfloat16))
    b_p = jnp.zeros((1, N_PAD), jnp.float32).at[:, :N_TOTAL].set(
        jnp.asarray(b, jnp.float32).reshape(1, N_TOTAL))
    return w_p, b_p


# --------------------------------------------------------------------------
# Fused kernel: K-tiled matmul + bias + 3x (cross-entropy, accuracy)
# --------------------------------------------------------------------------
def _fused_kernel(x_ref, w_ref, b_ref, labels_ref, logits_ref, metrics_ref,
                  *, batch):
    k = pl.program_id(0)

    # MXU: bf16 x bf16 -> f32.  x is streamed as f32 and cast in VMEM.
    acc = jnp.dot(x_ref[...].astype(jnp.bfloat16), w_ref[...],
                  preferred_element_type=jnp.float32)

    @pl.when(k == 0)
    def _first():
        logits_ref[...] = acc            # no zero-init + read-modify-write

    @pl.when(k > 0)
    def _rest():
        logits_ref[...] += acc

    @pl.when(k == pl.num_programs(0) - 1)
    def _finalize():
        logits = logits_ref[...] + b_ref[...]          # [b_pad, N_PAD] f32
        logits_ref[...] = logits

        b_pad = logits.shape[0]
        lane = jax.lax.broadcasted_iota(jnp.int32, (b_pad, N_PAD), 1)
        row = jax.lax.broadcasted_iota(jnp.int32, (b_pad, 1), 0)
        row_valid = row < batch                        # mask padded batch rows
        inv_b = jnp.float32(1.0 / batch)
        neg_inf = jnp.float32(-jnp.inf)

        # per-head masks + maxes (3 XLU reductions)
        head_masks = []
        head_maxes = []
        for off, size in _HEADS:
            hm = (lane >= off) & (lane < off + size)
            head_masks.append(hm)
            head_maxes.append(
                jnp.max(jnp.where(hm, logits, neg_inf), axis=1, keepdims=True))
        m_g, m_v, m_c = head_maxes

        # ONE full-width exp: per-lane head max via two selects, pad lanes -> 0
        m_lane = jnp.where(lane < N_GRAPHEME, m_g,
                           jnp.where(lane < N_GRAPHEME + N_VOWEL, m_v, m_c))
        z = jnp.where(lane < N_TOTAL, logits - m_lane, neg_inf)
        e = jnp.exp(z)

        stats = []
        for h, ((off, size), hm, m_h) in enumerate(
                zip(_HEADS, head_masks, head_maxes)):
            glabel = labels_ref[:, h:h + 1]            # [b_pad,1] global class id

            # cross-entropy (mean over batch), max-stabilized LSE
            s_h = jnp.sum(jnp.where(hm, e, 0.0), axis=1, keepdims=True)
            lse_h = m_h + jnp.log(s_h)
            tl_h = jnp.sum(jnp.where(lane == glabel, logits, 0.0),
                           axis=1, keepdims=True)      # one-hot gather
            per_row = jnp.where(row_valid, lse_h - tl_h, 0.0)
            loss_h = jnp.sum(per_row, axis=0, keepdims=True) * inv_b   # (1,1)

            # accuracy: first-max index == label (reuses the head max)
            pred_h = jnp.min(jnp.where(hm & (logits == m_h), lane, N_PAD),
                             axis=1, keepdims=True)
            correct = jnp.where(row_valid & (pred_h == glabel), 1.0, 0.0)
            acc_h = jnp.sum(correct, axis=0, keepdims=True) * inv_b    # (1,1)

            stats.append((loss_h, acc_h))

        (loss_g, acc_g), (loss_v, acc_v), (loss_c, acc_c) = stats
        loss_sum = loss_g + loss_v + loss_c

        # Pack the 7 scalars into one lane-dense (1,128) metrics vector.
        mlane = jax.lax.broadcasted_iota(jnp.int32, (1, 128), 1)
        packed = jnp.zeros((1, 128), jnp.float32)
        for idx, val in enumerate(
                (loss_g, loss_v, loss_c, acc_g, acc_v, acc_c, loss_sum)):
            packed = jnp.where(mlane == idx, val, packed)
        metrics_ref[...] = packed


def _fused_forward_call(x_in, w_p, b_p, labels_i32, *, batch, tk):
    b_pad, f_pad = x_in.shape
    n_k = f_pad // tk
    x_bytes = jnp.dtype(x_in.dtype).itemsize

    # VMEM budget: double-buffered x & W tiles + resident f32 logits + labels
    vmem_bytes = (2 * b_pad * tk * x_bytes
                  + 2 * tk * N_PAD * 2
                  + 2 * b_pad * N_PAD * 4
                  + 2 * b_pad * LABEL_LANES * 4
                  + 2 * N_PAD * 4
                  + 2 * 128 * 4)
    vmem_limit = min(max(2 * vmem_bytes, 16 * 1024 * 1024), 48 * 1024 * 1024)

    kernel = functools.partial(_fused_kernel, batch=batch)
    logits, metrics = pl.pallas_call(
        kernel,
        out_shape=(
            jax.ShapeDtypeStruct((b_pad, N_PAD), jnp.float32),
            jax.ShapeDtypeStruct((1, 128), jnp.float32),
        ),
        grid_spec=pltpu.PrefetchScalarGridSpec(
            num_scalar_prefetch=0,
            grid=(n_k,),
            in_specs=[
                pl.BlockSpec((b_pad, tk), lambda k: (0, k)),          # x tile
                pl.BlockSpec((tk, N_PAD), lambda k: (k, 0)),          # W tile
                pl.BlockSpec((1, N_PAD), lambda k: (0, 0)),           # bias
                pl.BlockSpec((b_pad, LABEL_LANES), lambda k: (0, 0)), # labels
            ],
            out_specs=[
                pl.BlockSpec((b_pad, N_PAD), lambda k: (0, 0)),       # logits
                pl.BlockSpec((1, 128), lambda k: (0, 0)),             # metrics
            ],
        ),
        compiler_params=pltpu.CompilerParams(
            dimension_semantics=("arbitrary",),        # K is a reduction axis
            vmem_limit_bytes=vmem_limit,               # safe on v7x (64 MiB)
        ),
    )(x_in, w_p, b_p, labels_i32)
    return logits, metrics


# --------------------------------------------------------------------------
# BengaliClassifier.forward equivalent
# --------------------------------------------------------------------------
@jax.jit
def bengali_classifier_forward(x, y, w_p, b_p):
    """x: [B,C,H,W] f32 (NCHW); y: [B,3] int labels; w_p/b_p from
    prepare_predictor_params (padded bf16 weights, f32 bias)."""
    B = x.shape[0]
    x_flat = x.reshape(B, -1)
    F_dim = x_flat.shape[1]

    tk, f_pad = _choose_tiling(F_dim)
    assert w_p.shape == (f_pad, N_PAD), "w_p not prepared for this input size"
    b_pad = _round_up(max(B, 8), 8)

    # x stays f32 (cast to bf16 happens inside the kernel); pad only if needed.
    if (b_pad, f_pad) == (B, F_dim):
        x_in = x_flat
    else:
        x_in = jnp.zeros((b_pad, f_pad), x_flat.dtype).at[:B, :F_dim].set(x_flat)

    # per-head labels converted to global class ids, packed in lanes 0..2
    offs = jnp.array([0, N_GRAPHEME, N_GRAPHEME + N_VOWEL], jnp.int32)
    y_glob = y.astype(jnp.int32) + offs[None, :]
    labels_p = jnp.zeros((b_pad, LABEL_LANES), jnp.int32).at[:B, :3].set(y_glob)

    logits_pad, metrics_vec = _fused_forward_call(
        x_in, w_p, b_p, labels_p, batch=B, tk=tk)

    pred = logits_pad[:B, :N_TOTAL]                    # torch.split source

    loss_g = metrics_vec[0, 0]
    loss_v = metrics_vec[0, 1]
    loss_c = metrics_vec[0, 2]
    acc_g = metrics_vec[0, 3]
    acc_v = metrics_vec[0, 4]
    acc_c = metrics_vec[0, 5]
    loss_sum = metrics_vec[0, 6]

    metrics = {
        "ohem_loss": loss_sum,
        "ohem_loss_grapheme": loss_g,
        "ohem_loss_vowel": loss_v,
        "ohem_loss_consonant": loss_c,
        "cr_loss": loss_sum,
        "cr_loss_grapheme": loss_g,
        "cr_loss_vowel": loss_v,
        "cr_loss_consonant": loss_c,
        "acc_grapheme": acc_g,
        "acc_vowel": acc_v,
        "acc_consonant": acc_c,
    }
    return loss_sum, metrics, pred


if __name__ == "__main__":
    key = jax.random.PRNGKey(0)
    kx, kw, kb, kg, kv, kc = jax.random.split(key, 6)

    B, C, H, W = 8, 4, 16, 16            # small NCHW input
    F_dim = C * H * W                    # 1024

    x = jax.random.normal(kx, (B, C, H, W), dtype=jnp.float32)
    y = jnp.stack(
        [
            jax.random.randint(kg, (B,), 0, N_GRAPHEME),
            jax.random.randint(kv, (B,), 0, N_VOWEL),
            jax.random.randint(kc, (B,), 0, N_CONSONANT),
        ],
        axis=1,
    ).astype(jnp.int32)                  # [B, 3]

    # deterministic synthetic predictor parameters (single linear head)
    w = (jax.random.normal(kw, (F_dim, N_TOTAL), dtype=jnp.float32)
         * (1.0 / jnp.sqrt(F_dim)))
    b = jax.random.normal(kb, (1, N_TOTAL), dtype=jnp.float32) * 0.01

    # parameter prep happens ONCE, outside the per-step jitted forward
    w_p, b_p = prepare_predictor_params(w, b)
    jax.block_until_ready((w_p, b_p))

    loss, metrics, pred = bengali_classifier_forward(x, y, w_p, b_p)
    jax.block_until_ready((loss, metrics, pred))

    # ---- light pure-JAX reference (bf16 inputs, f32 accumulate) ----
    x_flat = x.reshape(B, -1)
    ref_logits = jnp.dot(x_flat.astype(jnp.bfloat16), w.astype(jnp.bfloat16),
                         preferred_element_type=jnp.float32) + b

    def ref_ce_acc(lo, lab):
        lse = jax.nn.logsumexp(lo, axis=1)
        tl = jnp.take_along_axis(lo, lab[:, None], axis=1)[:, 0]
        return (jnp.mean(lse - tl),
                jnp.mean((jnp.argmax(lo, axis=1) == lab).astype(jnp.float32)))

    rg = ref_ce_acc(ref_logits[:, :N_GRAPHEME], y[:, 0])
    rv = ref_ce_acc(ref_logits[:, N_GRAPHEME:N_GRAPHEME + N_VOWEL], y[:, 1])
    rc = ref_ce_acc(ref_logits[:, N_GRAPHEME + N_VOWEL:], y[:, 2])

    assert pred.shape == (B, N_TOTAL)
    assert bool(jnp.isfinite(loss))
    assert jnp.allclose(pred, ref_logits, atol=5e-2, rtol=5e-2)
    assert jnp.allclose(metrics["cr_loss_grapheme"], rg[0], atol=5e-2)
    assert jnp.allclose(metrics["cr_loss_vowel"], rv[0], atol=5e-2)
    assert jnp.allclose(metrics["cr_loss_consonant"], rc[0], atol=5e-2)
    assert jnp.allclose(loss,
                        metrics["cr_loss_grapheme"] + metrics["cr_loss_vowel"]
                        + metrics["cr_loss_consonant"], atol=1e-5)
    # accuracy: allow at most one disagreement from bf16 argmax ties
    assert jnp.allclose(metrics["acc_grapheme"], rg[1], atol=0.2)
    assert jnp.allclose(metrics["acc_vowel"], rv[1], atol=0.2)
    assert jnp.allclose(metrics["acc_consonant"], rc[1], atol=0.2)

    print("KERNEL_OK")
</pallas_src>

<mosaic_0001>
module attributes {stable_mosaic.version = 11 : i64} {
  func.func @_fused_kernel(%arg0: i32, %arg1: memref<8x1024xf32, #tpu.memory_space<vmem>>, %arg2: memref<1024x256xbf16, #tpu.memory_space<vmem>>, %arg3: memref<1x256xf32, #tpu.memory_space<vmem>>, %arg4: memref<8x128xi32, #tpu.memory_space<vmem>>, %arg5: memref<8x256xf32, #tpu.memory_space<vmem>>, %arg6: memref<1x128xf32, #tpu.memory_space<vmem>>) attributes {dimension_semantics = [#tpu.dimension_semantics<arbitrary>], iteration_bounds = array<i64: 1>, scalar_prefetch = 0 : i64, scratch_operands = 0 : i64, tpu.core_type = #tpu.core_type<tc>, window_params = [{transform_indices = @transform_0, window_bounds = array<i64: 8, 1024>}, {transform_indices = @transform_1, window_bounds = array<i64: 1024, 256>}, {pipeline_mode = #tpu.pipeline_mode<synchronous>, transform_indices = @transform_2, window_bounds = array<i64: 1, 256>}, {pipeline_mode = #tpu.pipeline_mode<synchronous>, transform_indices = @transform_3, window_bounds = array<i64: 8, 128>}, {pipeline_mode = #tpu.pipeline_mode<synchronous>, transform_indices = @transform_4, window_bounds = array<i64: 8, 256>}, {pipeline_mode = #tpu.pipeline_mode<synchronous>, transform_indices = @transform_5, window_bounds = array<i64: 1, 128>}]} {
    %c0 = arith.constant 0 : index
    %c0_0 = arith.constant 0 : index
    %0 = vector.load %arg1[%c0, %c0_0] : memref<8x1024xf32, #tpu.memory_space<vmem>>, vector<8x1024xf32>
    %1 = arith.truncf %0 : vector<8x1024xf32> to vector<8x1024xbf16>
    %c0_1 = arith.constant 0 : index
    %c0_2 = arith.constant 0 : index
    %2 = vector.load %arg2[%c0_1, %c0_2] : memref<1024x256xbf16, #tpu.memory_space<vmem>>, vector<1024x256xbf16>
    %cst = arith.constant dense<0.000000e+00> : vector<8x256xf32>
    %3 = tpu.matmul %1, %2, %cst {dimension_numbers = #tpu.dot_dimension_numbers<[1], [0], [0], [1], [0, 0, 1, 1], [], []>} : vector<8x1024xbf16>, vector<1024x256xbf16>, vector<8x256xf32> -> vector<8x256xf32>
    %c0_i32 = arith.constant 0 : i32
    %4 = arith.cmpi eq, %arg0, %c0_i32 : i32
    %5 = arith.extui %4 : i1 to i32
    %c0_i32_3 = arith.constant 0 : i32
    %6 = arith.cmpi ne, %5, %c0_i32_3 : i32
    scf.if %6 {
      %c0_8 = arith.constant 0 : index
      %c0_9 = arith.constant 0 : index
      %13 = vector.load %arg5[%c0_8, %c0_9] : memref<8x256xf32, #tpu.memory_space<vmem>>, vector<8x256xf32>
      tpu.vector_store %arg5[%c0_8, %c0_9], %3 {strides = array<i32>} : memref<8x256xf32, #tpu.memory_space<vmem>>, vector<8x256xf32>,
    } else {
    }
    %c0_i32_4 = arith.constant 0 : i32
    %7 = arith.cmpi sgt, %arg0, %c0_i32_4 : i32
    %8 = arith.extui %7 : i1 to i32
    %c0_i32_5 = arith.constant 0 : i32
    %9 = arith.cmpi ne, %8, %c0_i32_5 : i32
    scf.if %9 {
      %c0_8 = arith.constant 0 : index
      %c0_9 = arith.constant 0 : index
      %13 = vector.load %arg5[%c0_8, %c0_9] : memref<8x256xf32, #tpu.memory_space<vmem>>, vector<8x256xf32>
      %14 = arith.addf %13, %3 : vector<8x256xf32>
      %c0_10 = arith.constant 0 : index
      %c0_11 = arith.constant 0 : index
      %15 = vector.load %arg5[%c0_10, %c0_11] : memref<8x256xf32, #tpu.memory_space<vmem>>, vector<8x256xf32>
      tpu.vector_store %arg5[%c0_10, %c0_11], %14 {strides = array<i32>} : memref<8x256xf32, #tpu.memory_space<vmem>>, vector<8x256xf32>,
    } else {
    }
    %c0_i32_6 = arith.constant 0 : i32
    %10 = arith.cmpi eq, %arg0, %c0_i32_6 : i32
    %11 = arith.extui %10 : i1 to i32
    %c0_i32_7 = arith.constant 0 : i32
    %12 = arith.cmpi ne, %11, %c0_i32_7 : i32
    scf.if %12 {
      %c0_8 = arith.constant 0 : index
      %c0_9 = arith.constant 0 : index
      %13 = vector.load %arg5[%c0_8, %c0_9] : memref<8x256xf32, #tpu.memory_space<vmem>>, vector<8x256xf32>
      %c0_10 = arith.constant 0 : index
      %c0_11 = arith.constant 0 : index
      %14 = vector.load %arg3[%c0_10, %c0_11] : memref<1x256xf32, #tpu.memory_space<vmem>>, vector<1x256xf32>
      %15 = vector.broadcast %14 : vector<1x256xf32> to vector<8x256xf32>
      %16 = arith.addf %13, %15 : vector<8x256xf32>
      %c0_12 = arith.constant 0 : index
      %c0_13 = arith.constant 0 : index
      %17 = vector.load %arg5[%c0_12, %c0_13] : memref<8x256xf32, #tpu.memory_space<vmem>>, vector<8x256xf32>
      tpu.vector_store %arg5[%c0_12, %c0_13], %16 {strides = array<i32>} : memref<8x256xf32, #tpu.memory_space<vmem>>, vector<8x256xf32>,
      %18 = tpu.iota {dimensions = array<i32: 1>} : vector<8x256xi32>
      %19 = tpu.iota {dimensions = array<i32: 0>} : vector<8x1xi32>
      %c8_i32 = arith.constant 8 : i32
      %20 = vector.broadcast %c8_i32 : i32 to vector<8x1xi32>
      %21 = arith.cmpi slt, %19, %20 : vector<8x1xi32>
      %c0_i32_14 = arith.constant 0 : i32
      %22 = vector.broadcast %c0_i32_14 : i32 to vector<8x256xi32>
      %23 = arith.cmpi sge, %18, %22 : vector<8x256xi32>
      %c168_i32 = arith.constant 168 : i32
      %24 = vector.broadcast %c168_i32 : i32 to vector<8x256xi32>
      %25 = arith.cmpi slt, %18, %24 : vector<8x256xi32>
      %26 = arith.andi %23, %25 : vector<8x256xi1>
      %cst_15 = arith.constant 0xFF800000 : f32
      %27 = vector.broadcast %cst_15 : f32 to vector<8x256xf32>
      %28 = arith.select %26, %16, %27 : vector<8x256xi1>, vector<8x256xf32>
      %cst_16 = arith.constant dense<0xFF800000> : vector<8xf32>
      %29 = vector.multi_reduction <maximumf>, %28, %cst_16 [1] : vector<8x256xf32> to vector<8xf32>
      %30 = vector.shape_cast %29 : vector<8xf32> to vector<8x1xf32>
      %c168_i32_17 = arith.constant 168 : i32
      %31 = vector.broadcast %c168_i32_17 : i32 to vector<8x256xi32>
      %32 = arith.cmpi sge, %18, %31 : vector<8x256xi32>
      %c179_i32 = arith.constant 179 : i32
      %33 = vector.broadcast %c179_i32 : i32 to vector<8x256xi32>
      %34 = arith.cmpi slt, %18, %33 : vector<8x256xi32>
      %35 = arith.andi %32, %34 : vector<8x256xi1>
      %cst_18 = arith.constant 0xFF800000 : f32
      %36 = vector.broadcast %cst_18 : f32 to vector<8x256xf32>
      %37 = arith.select %35, %16, %36 : vector<8x256xi1>, vector<8x256xf32>
      %cst_19 = arith.constant dense<0xFF800000> : vector<8xf32>
      %38 = vector.multi_reduction <maximumf>, %37, %cst_19 [1] : vector<8x256xf32> to vector<8xf32>
      %39 = vector.shape_cast %38 : vector<8xf32> to vector<8x1xf32>
      %c179_i32_20 = arith.constant 179 : i32
      %40 = vector.broadcast %c179_i32_20 : i32 to vector<8x256xi32>
      %41 = arith.cmpi sge, %18, %40 : vector<8x256xi32>
      %c186_i32 = arith.constant 186 : i32
      %42 = vector.broadcast %c186_i32 : i32 to vector<8x256xi32>
      %43 = arith.cmpi slt, %18, %42 : vector<8x256xi32>
      %44 = arith.andi %41, %43 : vector<8x256xi1>
      %cst_21 = arith.constant 0xFF800000 : f32
      %45 = vector.broadcast %cst_21 : f32 to vector<8x256xf32>
      %46 = arith.select %44, %16, %45 : vector<8x256xi1>, vector<8x256xf32>
      %cst_22 = arith.constant dense<0xFF800000> : vector<8xf32>
      %47 = vector.multi_reduction <maximumf>, %46, %cst_22 [1] : vector<8x256xf32> to vector<8xf32>
      %48 = vector.shape_cast %47 : vector<8xf32> to vector<8x1xf32>
      %c168_i32_23 = arith.constant 168 : i32
      %49 = vector.broadcast %c168_i32_23 : i32 to vector<8x256xi32>
      %50 = arith.cmpi slt, %18, %49 : vector<8x256xi32>
      %c179_i32_24 = arith.constant 179 : i32
      %51 = vector.broadcast %c179_i32_24 : i32 to vector<8x256xi32>
      %52 = arith.cmpi slt, %18, %51 : vector<8x256xi32>
      %53 = vector.shape_cast %39 : vector<8x1xf32> to vector<8x1xf32>
      %54 = vector.broadcast %53 : vector<8x1xf32> to vector<8x256xf32>
      %55 = vector.shape_cast %48 : vector<8x1xf32> to vector<8x1xf32>
      %56 = vector.broadcast %55 : vector<8x1xf32> to vector<8x256xf32>
      %57 = arith.select %52, %54, %56 : vector<8x256xi1>, vector<8x256xf32>
      %58 = vector.shape_cast %30 : vector<8x1xf32> to vector<8x1xf32>
      %59 = vector.broadcast %58 : vector<8x1xf32> to vector<8x256xf32>
      %60 = arith.select %50, %59, %57 : vector<8x256xi1>, vector<8x256xf32>
      %c186_i32_25 = arith.constant 186 : i32
      %61 = vector.broadcast %c186_i32_25 : i32 to vector<8x256xi32>
      %62 = arith.cmpi slt, %18, %61 : vector<8x256xi32>
      %63 = arith.subf %16, %60 : vector<8x256xf32>
      %cst_26 = arith.constant 0xFF800000 : f32
      %64 = vector.broadcast %cst_26 : f32 to vector<8x256xf32>
      %65 = arith.select %62, %63, %64 : vector<8x256xi1>, vector<8x256xf32>
      %66 = math.exp %65 : vector<8x256xf32>
      %c0_27 = arith.constant 0 : index
      %c0_28 = arith.constant 0 : index
      %67 = vector.load %arg4[%c0_27, %c0_28] : memref<8x128xi32, #tpu.memory_space<vmem>>, vector<8x1xi32>
      %cst_29 = arith.constant 0.000000e+00 : f32
      %68 = vector.broadcast %cst_29 : f32 to vector<8x256xf32>
      %69 = arith.select %26, %66, %68 : vector<8x256xi1>, vector<8x256xf32>
      %cst_30 = arith.constant dense<0.000000e+00> : vector<8xf32>
      %70 = vector.multi_reduction <add>, %69, %cst_30 [1] : vector<8x256xf32> to vector<8xf32>
      %71 = vector.shape_cast %70 : vector<8xf32> to vector<8x1xf32>
      %72 = math.log %71 : vector<8x1xf32>
      %73 = arith.addf %30, %72 : vector<8x1xf32>
      %74 = vector.broadcast %67 : vector<8x1xi32> to vector<8x256xi32>
      %75 = arith.cmpi eq, %18, %74 : vector<8x256xi32>
      %cst_31 = arith.constant 0.000000e+00 : f32
      %76 = vector.broadcast %cst_31 : f32 to vector<8x256xf32>
      %77 = arith.select %75, %16, %76 : vector<8x256xi1>, vector<8x256xf32>
      %cst_32 = arith.constant dense<0.000000e+00> : vector<8xf32>
      %78 = vector.multi_reduction <add>, %77, %cst_32 [1] : vector<8x256xf32> to vector<8xf32>
      %79 = vector.shape_cast %78 : vector<8xf32> to vector<8x1xf32>
      %80 = arith.subf %73, %79 : vector<8x1xf32>
      %cst_33 = arith.constant 0.000000e+00 : f32
      %81 = vector.broadcast %cst_33 : f32 to vector<8x1xf32>
      %82 = arith.select %21, %80, %81 : vector<8x1xi1>, vector<8x1xf32>
      %cst_34 = arith.constant dense<0.000000e+00> : vector<1xf32>
      %83 = vector.multi_reduction <add>, %82, %cst_34 [0] : vector<8x1xf32> to vector<1xf32>
      %84 = vector.shape_cast %83 : vector<1xf32> to vector<1x1xf32>
      %cst_35 = arith.constant 1.250000e-01 : f32
      %85 = vector.broadcast %cst_35 : f32 to vector<1x1xf32>
      %86 = arith.mulf %84, %85 : vector<1x1xf32>
      %87 = vector.broadcast %30 : vector<8x1xf32> to vector<8x256xf32>
      %88 = arith.cmpf oeq, %16, %87 : vector<8x256xf32>
      %89 = arith.andi %26, %88 : vector<8x256xi1>
      %c256_i32 = arith.constant 256 : i32
      %90 = vector.broadcast %c256_i32 : i32 to vector<8x256xi32>
      %91 = arith.select %89, %18, %90 : vector<8x256xi1>, vector<8x256xi32>
      %cst_36 = arith.constant dense<2147483647> : vector<8xi32>
      %92 = vector.multi_reduction <minsi>, %91, %cst_36 [1] : vector<8x256xi32> to vector<8xi32>
      %93 = vector.shape_cast %92 : vector<8xi32> to vector<8x1xi32>
      %94 = arith.cmpi eq, %93, %67 : vector<8x1xi32>
      %95 = arith.andi %21, %94 : vector<8x1xi1>
      %cst_37 = arith.constant 1.000000e+00 : f32
      %cst_38 = arith.constant 0.000000e+00 : f32
      %96 = vector.broadcast %cst_37 : f32 to vector<8x1xf32>
      %97 = vector.broadcast %cst_38 : f32 to vector<8x1xf32>
      %98 = arith.select %95, %96, %97 : vector<8x1xi1>, vector<8x1xf32>
      %cst_39 = arith.constant dense<0.000000e+00> : vector<1xf32>
      %99 = vector.multi_reduction <add>, %98, %cst_39 [0] : vector<8x1xf32> to vector<1xf32>
      %100 = vector.shape_cast %99 : vector<1xf32> to vector<1x1xf32>
      %cst_40 = arith.constant 1.250000e-01 : f32
      %101 = vector.broadcast %cst_40 : f32 to vector<1x1xf32>
      %102 = arith.mulf %100, %101 : vector<1x1xf32>
      %c0_41 = arith.constant 0 : index
      %c1 = arith.constant 1 : index
      %103 = vector.load %arg4[%c0_41, %c1] : memref<8x128xi32, #tpu.memory_space<vmem>>, vector<8x1xi32>
      %cst_42 = arith.constant 0.000000e+00 : f32
      %104 = vector.broadcast %cst_42 : f32 to vector<8x256xf32>
      %105 = arith.select %35, %66, %104 : vector<8x256xi1>, vector<8x256xf32>
      %cst_43 = arith.constant dense<0.000000e+00> : vector<8xf32>
      %106 = vector.multi_reduction <add>, %105, %cst_43 [1] : vector<8x256xf32> to vector<8xf32>
      %107 = vector.shape_cast %106 : vector<8xf32> to vector<8x1xf32>
      %108 = math.log %107 : vector<8x1xf32>
      %109 = arith.addf %39, %108 : vector<8x1xf32>
      %110 = vector.broadcast %103 : vector<8x1xi32> to vector<8x256xi32>
      %111 = arith.cmpi eq, %18, %110 : vector<8x256xi32>
      %cst_44 = arith.constant 0.000000e+00 : f32
      %112 = vector.broadcast %cst_44 : f32 to vector<8x256xf32>
      %113 = arith.select %111, %16, %112 : vector<8x256xi1>, vector<8x256xf32>
      %cst_45 = arith.constant dense<0.000000e+00> : vector<8xf32>
      %114 = vector.multi_reduction <add>, %113, %cst_45 [1] : vector<8x256xf32> to vector<8xf32>
      %115 = vector.shape_cast %114 : vector<8xf32> to vector<8x1xf32>
      %116 = arith.subf %109, %115 : vector<8x1xf32>
      %cst_46 = arith.constant 0.000000e+00 : f32
      %117 = vector.broadcast %cst_46 : f32 to vector<8x1xf32>
      %118 = arith.select %21, %116, %117 : vector<8x1xi1>, vector<8x1xf32>
      %cst_47 = arith.constant dense<0.000000e+00> : vector<1xf32>
      %119 = vector.multi_reduction <add>, %118, %cst_47 [0] : vector<8x1xf32> to vector<1xf32>
      %120 = vector.shape_cast %119 : vector<1xf32> to vector<1x1xf32>
      %cst_48 = arith.constant 1.250000e-01 : f32
      %121 = vector.broadcast %cst_48 : f32 to vector<1x1xf32>
      %122 = arith.mulf %120, %121 : vector<1x1xf32>
      %123 = vector.broadcast %39 : vector<8x1xf32> to vector<8x256xf32>
      %124 = arith.cmpf oeq, %16, %123 : vector<8x256xf32>
      %125 = arith.andi %35, %124 : vector<8x256xi1>
      %c256_i32_49 = arith.constant 256 : i32
      %126 = vector.broadcast %c256_i32_49 : i32 to vector<8x256xi32>
      %127 = arith.select %125, %18, %126 : vector<8x256xi1>, vector<8x256xi32>
      %cst_50 = arith.constant dense<2147483647> : vector<8xi32>
      %128 = vector.multi_reduction <minsi>, %127, %cst_50 [1] : vector<8x256xi32> to vector<8xi32>
      %129 = vector.shape_cast %128 : vector<8xi32> to vector<8x1xi32>
      %130 = arith.cmpi eq, %129, %103 : vector<8x1xi32>
      %131 = arith.andi %21, %130 : vector<8x1xi1>
      %cst_51 = arith.constant 1.000000e+00 : f32
      %cst_52 = arith.constant 0.000000e+00 : f32
      %132 = vector.broadcast %cst_51 : f32 to vector<8x1xf32>
      %133 = vector.broadcast %cst_52 : f32 to vector<8x1xf32>
      %134 = arith.select %131, %132, %133 : vector<8x1xi1>, vector<8x1xf32>
      %cst_53 = arith.constant dense<0.000000e+00> : vector<1xf32>
      %135 = vector.multi_reduction <add>, %134, %cst_53 [0] : vector<8x1xf32> to vector<1xf32>
      %136 = vector.shape_cast %135 : vector<1xf32> to vector<1x1xf32>
      %cst_54 = arith.constant 1.250000e-01 : f32
      %137 = vector.broadcast %cst_54 : f32 to vector<1x1xf32>
      %138 = arith.mulf %136, %137 : vector<1x1xf32>
      %c0_55 = arith.constant 0 : index
      %c2 = arith.constant 2 : index
      %139 = vector.load %arg4[%c0_55, %c2] : memref<8x128xi32, #tpu.memory_space<vmem>>, vector<8x1xi32>
      %cst_56 = arith.constant 0.000000e+00 : f32
      %140 = vector.broadcast %cst_56 : f32 to vector<8x256xf32>
      %141 = arith.select %44, %66, %140 : vector<8x256xi1>, vector<8x256xf32>
      %cst_57 = arith.constant dense<0.000000e+00> : vector<8xf32>
      %142 = vector.multi_reduction <add>, %141, %cst_57 [1] : vector<8x256xf32> to vector<8xf32>
      %143 = vector.shape_cast %142 : vector<8xf32> to vector<8x1xf32>
      %144 = math.log %143 : vector<8x1xf32>
      %145 = arith.addf %48, %144 : vector<8x1xf32>
      %146 = vector.broadcast %139 : vector<8x1xi32> to vector<8x256xi32>
      %147 = arith.cmpi eq, %18, %146 : vector<8x256xi32>
      %cst_58 = arith.constant 0.000000e+00 : f32
      %148 = vector.broadcast %cst_58 : f32 to vector<8x256xf32>
      %149 = arith.select %147, %16, %148 : vector<8x256xi1>, vector<8x256xf32>
      %cst_59 = arith.constant dense<0.000000e+00> : vector<8xf32>
      %150 = vector.multi_reduction <add>, %149, %cst_59 [1] : vector<8x256xf32> to vector<8xf32>
      %151 = vector.shape_cast %150 : vector<8xf32> to vector<8x1xf32>
      %152 = arith.subf %145, %151 : vector<8x1xf32>
      %cst_60 = arith.constant 0.000000e+00 : f32
      %153 = vector.broadcast %cst_60 : f32 to vector<8x1xf32>
      %154 = arith.select %21, %152, %153 : vector<8x1xi1>, vector<8x1xf32>
      %cst_61 = arith.constant dense<0.000000e+00> : vector<1xf32>
      %155 = vector.multi_reduction <add>, %154, %cst_61 [0] : vector<8x1xf32> to vector<1xf32>
      %156 = vector.shape_cast %155 : vector<1xf32> to vector<1x1xf32>
      %cst_62 = arith.constant 1.250000e-01 : f32
      %157 = vector.broadcast %cst_62 : f32 to vector<1x1xf32>
      %158 = arith.mulf %156, %157 : vector<1x1xf32>
      %159 = vector.broadcast %48 : vector<8x1xf32> to vector<8x256xf32>
      %160 = arith.cmpf oeq, %16, %159 : vector<8x256xf32>
      %161 = arith.andi %44, %160 : vector<8x256xi1>
      %c256_i32_63 = arith.constant 256 : i32
      %162 = vector.broadcast %c256_i32_63 : i32 to vector<8x256xi32>
      %163 = arith.select %161, %18, %162 : vector<8x256xi1>, vector<8x256xi32>
      %cst_64 = arith.constant dense<2147483647> : vector<8xi32>
      %164 = vector.multi_reduction <minsi>, %163, %cst_64 [1] : vector<8x256xi32> to vector<8xi32>
      %165 = vector.shape_cast %164 : vector<8xi32> to vector<8x1xi32>
      %166 = arith.cmpi eq, %165, %139 : vector<8x1xi32>
      %167 = arith.andi %21, %166 : vector<8x1xi1>
      %cst_65 = arith.constant 1.000000e+00 : f32
      %cst_66 = arith.constant 0.000000e+00 : f32
      %168 = vector.broadcast %cst_65 : f32 to vector<8x1xf32>
      %169 = vector.broadcast %cst_66 : f32 to vector<8x1xf32>
      %170 = arith.select %167, %168, %169 : vector<8x1xi1>, vector<8x1xf32>
      %cst_67 = arith.constant dense<0.000000e+00> : vector<1xf32>
      %171 = vector.multi_reduction <add>, %170, %cst_67 [0] : vector<8x1xf32> to vector<1xf32>
      %172 = vector.shape_cast %171 : vector<1xf32> to vector<1x1xf32>
      %cst_68 = arith.constant 1.250000e-01 : f32
      %173 = vector.broadcast %cst_68 : f32 to vector<1x1xf32>
      %174 = arith.mulf %172, %173 : vector<1x1xf32>
      %175 = arith.addf %86, %122 : vector<1x1xf32>
      %176 = arith.addf %175, %158 : vector<1x1xf32>
      %177 = tpu.iota {dimensions = array<i32: 1>} : vector<1x128xi32>
      %cst_69 = arith.constant 0.000000e+00 : f32
      %178 = vector.broadcast %cst_69 : f32 to vector<1x128xf32>
      %c0_i32_70 = arith.constant 0 : i32
      %179 = vector.broadcast %c0_i32_70 : i32 to vector<1x128xi32>
      %180 = arith.cmpi eq, %177, %179 : vector<1x128xi32>
      %181 = vector.shape_cast %86 : vector<1x1xf32> to vector<1x1xf32>
      %182 = vector.broadcast %181 : vector<1x1xf32> to vector<1x128xf32>
      %183 = arith.select %180, %182, %178 : vector<1x128xi1>, vector<1x128xf32>
      %c1_i32 = arith.constant 1 : i32
      %184 = vector.broadcast %c1_i32 : i32 to vector<1x128xi32>
      %185 = arith.cmpi eq, %177, %184 : vector<1x128xi32>
      %186 = vector.shape_cast %122 : vector<1x1xf32> to vector<1x1xf32>
      %187 = vector.broadcast %186 : vector<1x1xf32> to vector<1x128xf32>
      %188 = arith.select %185, %187, %183 : vector<1x128xi1>, vector<1x128xf32>
      %c2_i32 = arith.constant 2 : i32
      %189 = vector.broadcast %c2_i32 : i32 to vector<1x128xi32>
      %190 = arith.cmpi eq, %177, %189 : vector<1x128xi32>
      %191 = vector.shape_cast %158 : vector<1x1xf32> to vector<1x1xf32>
      %192 = vector.broadcast %191 : vector<1x1xf32> to vector<1x128xf32>
      %193 = arith.select %190, %192, %188 : vector<1x128xi1>, vector<1x128xf32>
      %c3_i32 = arith.constant 3 : i32
      %194 = vector.broadcast %c3_i32 : i32 to vector<1x128xi32>
      %195 = arith.cmpi eq, %177, %194 : vector<1x128xi32>
      %196 = vector.shape_cast %102 : vector<1x1xf32> to vector<1x1xf32>
      %197 = vector.broadcast %196 : vector<1x1xf32> to vector<1x128xf32>
      %198 = arith.select %195, %197, %193 : vector<1x128xi1>, vector<1x128xf32>
      %c4_i32 = arith.constant 4 : i32
      %199 = vector.broadcast %c4_i32 : i32 to vector<1x128xi32>
      %200 = arith.cmpi eq, %177, %199 : vector<1x128xi32>
      %201 = vector.shape_cast %138 : vector<1x1xf32> to vector<1x1xf32>
      %202 = vector.broadcast %201 : vector<1x1xf32> to vector<1x128xf32>
      %203 = arith.select %200, %202, %198 : vector<1x128xi1>, vector<1x128xf32>
      %c5_i32 = arith.constant 5 : i32
      %204 = vector.broadcast %c5_i32 : i32 to vector<1x128xi32>
      %205 = arith.cmpi eq, %177, %204 : vector<1x128xi32>
      %206 = vector.shape_cast %174 : vector<1x1xf32> to vector<1x1xf32>
      %207 = vector.broadcast %206 : vector<1x1xf32> to vector<1x128xf32>
      %208 = arith.select %205, %207, %203 : vector<1x128xi1>, vector<1x128xf32>
      %c6_i32 = arith.constant 6 : i32
      %209 = vector.broadcast %c6_i32 : i32 to vector<1x128xi32>
      %210 = arith.cmpi eq, %177, %209 : vector<1x128xi32>
      %211 = vector.shape_cast %176 : vector<1x1xf32> to vector<1x1xf32>
      %212 = vector.broadcast %211 : vector<1x1xf32> to vector<1x128xf32>
      %213 = arith.select %210, %212, %208 : vector<1x128xi1>, vector<1x128xf32>
      %c0_71 = arith.constant 0 : index
      %c0_72 = arith.constant 0 : index
      %214 = vector.load %arg6[%c0_71, %c0_72] : memref<1x128xf32, #tpu.memory_space<vmem>>, vector<1x128xf32>
      tpu.vector_store %arg6[%c0_71, %c0_72], %213 {strides = array<i32>} : memref<1x128xf32, #tpu.memory_space<vmem>>, vector<1x128xf32>,
    } else {
    }
    return
  }
  func.func @transform_0(%arg0: i32) -> (i32, i32) {
    %c0_i32 = arith.constant 0 : i32
    %c0_i32_0 = arith.constant 0 : i32
    return %c0_i32, %arg0 : i32, i32
  }
  func.func @transform_1(%arg0: i32) -> (i32, i32) {
    %c0_i32 = arith.constant 0 : i32
    %c0_i32_0 = arith.constant 0 : i32
    return %arg0, %c0_i32 : i32, i32
  }
  func.func @transform_2(%arg0: i32) -> (i32, i32) {
    %c0_i32 = arith.constant 0 : i32
    %c0_i32_0 = arith.constant 0 : i32
    %c0_i32_1 = arith.constant 0 : i32
    return %c0_i32, %c0_i32_0 : i32, i32
  }
  func.func @transform_3(%arg0: i32) -> (i32, i32) {
    %c0_i32 = arith.constant 0 : i32
    %c0_i32_0 = arith.constant 0 : i32
    %c0_i32_1 = arith.constant 0 : i32
    return %c0_i32, %c0_i32_0 : i32, i32
  }
  func.func @transform_4(%arg0: i32) -> (i32, i32) {
    %c0_i32 = arith.constant 0 : i32
    %c0_i32_0 = arith.constant 0 : i32
    %c0_i32_1 = arith.constant 0 : i32
    return %c0_i32, %c0_i32_0 : i32, i32
  }
  func.func @transform_5(%arg0: i32) -> (i32, i32) {
    %c0_i32 = arith.constant 0 : i32
    %c0_i32_0 = arith.constant 0 : i32
    %c0_i32_1 = arith.constant 0 : i32
    return %c0_i32, %c0_i32_0 : i32, i32
  }
}

</mosaic_0001>

<llo_original>
// kernel: bengali_classifier_forward.1
$region0: #{bengali_classifier_forward.1}
  #allocation0 [shape = 'u32[]', space=smem, size = 0x4, offset = 0x4, fixed_abs, tag = 'smem constant byte address 0x4 - core index']
  #allocation1 [shape = 'u32[144,128]{1,0:T(1,128)}', space=vmem, size = 0x12000, scoped, tag = 'internal scratch']
  %s0 = inlined_call_operand.vmem [shape: f32[8,1024], index: 0, kind: input, shape index: {}]
  %s1 = inlined_call_operand.hbm [shape: bf16[1024,256], index: 1, kind: input, shape index: {}]
  %s2 = inlined_call_operand.vmem [shape: f32[1,256], index: 2, kind: input, shape index: {}]
  %s3 = inlined_call_operand.vmem [shape: s32[8,128], index: 3, kind: input, shape index: {}]
  %s4 = inlined_call_operand.hbm [shape: f32[8,256], index: 4, kind: output, shape index: {0}]
  %s5 = inlined_call_operand.vmem [shape: f32[1,128], index: 5, kind: output, shape index: {1}]
  %6 = xla_tuple %s4, %s5
  %s7 = sld [smem:[#allocation0]]
  $region50: #{bengali_classifier_forward.1} parent=0
    _
  %s9 = ssub.s32 1, %s7
  %s10 = scalar_select 0, %s9, %s7
  $region1: #{bengali_classifier_forward.1} parent=0
    #allocation2 [shape = 'u8[524288]{0}', space=vmem, size = 0x80000, scoped, tag = 'input window, operand 1, single buffered']
    #allocation3 [shape = 's32[1]{0}', space=sflag, size = 0x4, scoped, tag = 'scoped memory for bengali_classifier_forward.1']
    #allocation4 [shape = 's32[1]{0}', space=sflag, size = 0x4, scoped, tag = 'scoped memory for bengali_classifier_forward.1']
    #allocation5 [shape = 'u8[8192]{0}', space=vmem, size = 0x2000, scoped, tag = 'output window, operand 0, single buffered']
    %11 = vsyncpa [#allocation3], 0
    %12 = vsyncpa [#allocation4], 0
    // Predicated region
    $region2: #{bengali_classifier_forward.1} parent=1 // pred_check
      _
    $region3: #{bengali_classifier_forward.1} parent=1 // pred_check_branch
      %14 = sbr.rel (0) target = $region5
    $region4: #{bengali_classifier_forward.1} parent=1 // pred_region
      _
    $region5: #{bengali_classifier_forward.1} parent=1 // pred_fallthru
      _
    // Predicated region
    $region6: #{bengali_classifier_forward.1} parent=1 // pred_check
      _
    $region7: #{bengali_classifier_forward.1} parent=1 // pred_check_branch
      %16 = sbr.rel (0) target = $region9
    $region8: #{bengali_classifier_forward.1} parent=1 // pred_region
      %s18 = ssub.s32 16384, 16384
      %19 = vsyncadd [#allocation3], %s18
      %s20 = sshll.u32 [#allocation2], 4
      %s21 = int_to_ptr.vmem [resolvable:$true] %s20
      %26 = dma.hbm_to_vmem [thread:$0]  %s1, 16384, %s21, [#allocation3], 128, 128, 8
    $region9: #{bengali_classifier_forward.1} parent=1 // pred_fallthru
      _
    // Predicated region
    $region10: #{bengali_classifier_forward.1} parent=1 // pred_check
      _
    $region11: #{bengali_classifier_forward.1} parent=1 // pred_check_branch
      %28 = sbr.rel (0) target = $region13
    $region12: #{bengali_classifier_forward.1} parent=1 // pred_region
      _
    $region13: #{bengali_classifier_forward.1} parent=1 // pred_fallthru
      _
    // Predicated region
    $region14: #{bengali_classifier_forward.1} parent=1 // pred_check
      _
    $region15: #{bengali_classifier_forward.1} parent=1 // pred_check_branch
      %30 = sbr.rel (0) target = $region17
    $region16: #{bengali_classifier_forward.1} parent=1 // pred_region
      _
    $region17: #{bengali_classifier_forward.1} parent=1 // pred_fallthru
      _
    // Predicated region
    $region18: #{bengali_classifier_forward.1} parent=1 // pred_check
      _
    $region19: #{bengali_classifier_forward.1} parent=1 // pred_check_branch
      %32 = sbr.rel (0) target = $region21
    $region20: #{bengali_classifier_forward.1} parent=1 // pred_region
      %33 = dma.done [#allocation3], 16384
    $region21: #{bengali_classifier_forward.1} parent=1 // pred_fallthru
      _
    %v34 = vld [vmem:[%s0] sm:$0xff]
    %v35 = vld [vmem:[%s0 + $0x8] sm:$0xff]
    %v36 = vld [vmem:[%s0 + $0x10] sm:$0xff]
    %v37 = vld [vmem:[%s0 + $0x18] sm:$0xff]
    %v38 = vld [vmem:[%s0 + $0x20] sm:$0xff]
    %v39 = vld [vmem:[%s0 + $0x28] sm:$0xff]
    %v40 = vld [vmem:[%s0 + $0x30] sm:$0xff]
    %v41 = vld [vmem:[%s0 + $0x38] sm:$0xff]
    %v42 = vpack.c.bf16 %v34, %v34
    %v43 = vpack.c.bf16 %v35, %v35
    %v44 = vpack.c.bf16 %v36, %v36
    %v45 = vpack.c.bf16 %v37, %v37
    %v46 = vpack.c.bf16 %v38, %v38
    %v47 = vpack.c.bf16 %v39, %v39
    %v48 = vpack.c.bf16 %v40, %v40
    %v49 = vpack.c.bf16 %v41, %v41
    %v50 = vld [vmem:[#allocation2] sm:$0xff]
    %v51 = vld [vmem:[#allocation2 + $0x8] sm:$0xff]
    %v52 = vld [vmem:[#allocation2 + $0x10] sm:$0xff]
    %v53 = vld [vmem:[#allocation2 + $0x18] sm:$0xff]
    %v54 = vld [vmem:[#allocation2 + $0x20] sm:$0xff]
    %v55 = vld [vmem:[#allocation2 + $0x28] sm:$0xff]
    %v56 = vld [vmem:[#allocation2 + $0x30] sm:$0xff]
    %v57 = vld [vmem:[#allocation2 + $0x38] sm:$0xff]
    %v58 = vld [vmem:[#allocation2 + $0x40] sm:$0xff]
    %v59 = vld [vmem:[#allocation2 + $0x48] sm:$0xff]
    %v60 = vld [vmem:[#allocation2 + $0x50] sm:$0xff]
    %v61 = vld [vmem:[#allocation2 + $0x58] sm:$0xff]
    %v62 = vld [vmem:[#allocation2 + $0x60] sm:$0xff]
    %v63 = vld [vmem:[#allocation2 + $0x68] sm:$0xff]
    %v64 = vld [vmem:[#allocation2 + $0x70] sm:$0xff]
    %v65 = vld [vmem:[#allocation2 + $0x78] sm:$0xff]
    %v66 = vld [vmem:[#allocation2 + $0x80] sm:$0xff]
    %v67 = vld [vmem:[#allocation2 + $0x88] sm:$0xff]
    %v68 = vld [vmem:[#allocation2 + $0x90] sm:$0xff]
    %v69 = vld [vmem:[#allocation2 + $0x98] sm:$0xff]
    %v70 = vld [vmem:[#allocation2 + $0xa0] sm:$0xff]
    %v71 = vld [vmem:[#allocation2 + $0xa8] sm:$0xff]
    %v72 = vld [vmem:[#allocation2 + $0xb0] sm:$0xff]
    %v73 = vld [vmem:[#allocation2 + $0xb8] sm:$0xff]
    %v74 = vld [vmem:[#allocation2 + $0xc0] sm:$0xff]
    %v75 = vld [vmem:[#allocation2 + $0xc8] sm:$0xff]
    %v76 = vld [vmem:[#allocation2 + $0xd0] sm:$0xff]
    %v77 = vld [vmem:[#allocation2 + $0xd8] sm:$0xff]
    %v78 = vld [vmem:[#allocation2 + $0xe0] sm:$0xff]
    %v79 = vld [vmem:[#allocation2 + $0xe8] sm:$0xff]
    %v80 = vld [vmem:[#allocation2 + $0xf0] sm:$0xff]
    %v81 = vld [vmem:[#allocation2 + $0xf8] sm:$0xff]
    %v82 = vld [vmem:[#allocation2 + $0x100] sm:$0xff]
    %v83 = vld [vmem:[#allocation2 + $0x108] sm:$0xff]
    %v84 = vld [vmem:[#allocation2 + $0x110] sm:$0xff]
    %v85 = vld [vmem:[#allocation2 + $0x118] sm:$0xff]
    %v86 = vld [vmem:[#allocation2 + $0x120] sm:$0xff]
    %v87 = vld [vmem:[#allocation2 + $0x128] sm:$0xff]
    %v88 = vld [vmem:[#allocation2 + $0x130] sm:$0xff]
    %v89 = vld [vmem:[#allocation2 + $0x138] sm:$0xff]
    %v90 = vld [vmem:[#allocation2 + $0x140] sm:$0xff]
    %v91 = vld [vmem:[#allocation2 + $0x148] sm:$0xff]
    %v92 = vld [vmem:[#allocation2 + $0x150] sm:$0xff]
    %v93 = vld [vmem:[#allocation2 + $0x158] sm:$0xff]
    %v94 = vld [vmem:[#allocation2 + $0x160] sm:$0xff]
    %v95 = vld [vmem:[#allocation2 + $0x168] sm:$0xff]
    %v96 = vld [vmem:[#allocation2 + $0x170] sm:$0xff]
    %v97 = vld [vmem:[#allocation2 + $0x178] sm:$0xff]
    %v98 = vld [vmem:[#allocation2 + $0x180] sm:$0xff]
    %v99 = vld [vmem:[#allocation2 + $0x188] sm:$0xff]
    %v100 = vld [vmem:[#allocation2 + $0x190] sm:$0xff]
    %v101 = vld [vmem:[#allocation2 + $0x198] sm:$0xff]
    %v102 = vld [vmem:[#allocation2 + $0x1a0] sm:$0xff]
    %v103 = vld [vmem:[#allocation2 + $0x1a8] sm:$0xff]
    %v104 = vld [vmem:[#allocation2 + $0x1b0] sm:$0xff]
    %v105 = vld [vmem:[#allocation2 + $0x1b8] sm:$0xff]
    %v106 = vld [vmem:[#allocation2 + $0x1c0] sm:$0xff]
    %v107 = vld [vmem:[#allocation2 + $0x1c8] sm:$0xff]
    %v108 = vld [vmem:[#allocation2 + $0x1d0] sm:$0xff]
    %v109 = vld [vmem:[#allocation2 + $0x1d8] sm:$0xff]
    %v110 = vld [vmem:[#allocation2 + $0x1e0] sm:$0xff]
    %v111 = vld [vmem:[#allocation2 + $0x1e8] sm:$0xff]
    %v112 = vld [vmem:[#allocation2 + $0x1f0] sm:$0xff]
    %v113 = vld [vmem:[#allocation2 + $0x1f8] sm:$0xff]
    %v114 = vld [vmem:[#allocation2 + $0x200] sm:$0xff]
    %v115 = vld [vmem:[#allocation2 + $0x208] sm:$0xff]
    %v116 = vld [vmem:[#allocation2 + $0x210] sm:$0xff]
    %v117 = vld [vmem:[#allocation2 + $0x218] sm:$0xff]
    %v118 = vld [vmem:[#allocation2 + $0x220] sm:$0xff]
    %v119 = vld [vmem:[#allocation2 + $0x228] sm:$0xff]
    %v120 = vld [vmem:[#allocation2 + $0x230] sm:$0xff]
    %v121 = vld [vmem:[#allocation2 + $0x238] sm:$0xff]
    %v122 = vld [vmem:[#allocation2 + $0x240] sm:$0xff]
    %v123 = vld [vmem:[#allocation2 + $0x248] sm:$0xff]
    %v124 = vld [vmem:[#allocation2 + $0x250] sm:$0xff]
    %v125 = vld [vmem:[#allocation2 + $0x258] sm:$0xff]
    %v126 = vld [vmem:[#allocation2 + $0x260] sm:$0xff]
    %v127 = vld [vmem:[#allocation2 + $0x268] sm:$0xff]
    %v128 = vld [vmem:[#allocation2 + $0x270] sm:$0xff]
    %v129 = vld [vmem:[#allocation2 + $0x278] sm:$0xff]
    %v130 = vld [vmem:[#allocation2 + $0x280] sm:$0xff]
    %v131 = vld [vmem:[#allocation2 + $0x288] sm:$0xff]
    %v132 = vld [vmem:[#allocation2 + $0x290] sm:$0xff]
    %v133 = vld [vmem:[#allocation2 + $0x298] sm:$0xff]
    %v134 = vld [vmem:[#allocation2 + $0x2a0] sm:$0xff]
    %v135 = vld [vmem:[#allocation2 + $0x2a8] sm:$0xff]
    %v136 = vld [vmem:[#allocation2 + $0x2b0] sm:$0xff]
    %v137 = vld [vmem:[#allocation2 + $0x2b8] sm:$0xff]
    %v138 = vld [vmem:[#allocation2 + $0x2c0] sm:$0xff]
    %v139 = vld [vmem:[#allocation2 + $0x2c8] sm:$0xff]
    %v140 = vld [vmem:[#allocation2 + $0x2d0] sm:$0xff]
    %v141 = vld [vmem:[#allocation2 + $0x2d8] sm:$0xff]
    %v142 = vld [vmem:[#allocation2 + $0x2e0] sm:$0xff]
    %v143 = vld [vmem:[#allocation2 + $0x2e8] sm:$0xff]
    %v144 = vld [vmem:[#allocation2 + $0x2f0] sm:$0xff]
    %v145 = vld [vmem:[#allocation2 + $0x2f8] sm:$0xff]
    %v146 = vld [vmem:[#allocation2 + $0x300] sm:$0xff]
    %v147 = vld [vmem:[#allocation2 + $0x308] sm:$0xff]
    %v148 = vld [vmem:[#allocation2 + $0x310] sm:$0xff]
    %v149 = vld [vmem:[#allocation2 + $0x318] sm:$0xff]
    %v150 = vld [vmem:[#allocation2 + $0x320] sm:$0xff]
    %v151 = vld [vmem:[#allocation2 + $0x328] sm:$0xff]
    %v152 = vld [vmem:[#allocation2 + $0x330] sm:$0xff]
    %v153 = vld [vmem:[#allocation2 + $0x338] sm:$0xff]
    %v154 = vld [vmem:[#allocation2 + $0x340] sm:$0xff]
    %v155 = vld [vmem:[#allocation2 + $0x348] sm:$0xff]
    %v156 = vld [vmem:[#allocation2 + $0x350] sm:$0xff]
    %v157 = vld [vmem:[#allocation2 + $0x358] sm:$0xff]
    %v158 = vld [vmem:[#allocation2 + $0x360] sm:$0xff]
    %v159 = vld [vmem:[#allocation2 + $0x368] sm:$0xff]
    %v160 = vld [vmem:[#allocation2 + $0x370] sm:$0xff]
    %v161 = vld [vmem:[#allocation2 + $0x378] sm:$0xff]
    %v162 = vld [vmem:[#allocation2 + $0x380] sm:$0xff]
    %v163 = vld [vmem:[#allocation2 + $0x388] sm:$0xff]
    %v164 = vld [vmem:[#allocation2 + $0x390] sm:$0xff]
    %v165 = vld [vmem:[#allocation2 + $0x398] sm:$0xff]
    %v166 = vld [vmem:[#allocation2 + $0x3a0] sm:$0xff]
    %v167 = vld [vmem:[#allocation2 + $0x3a8] sm:$0xff]
    %v168 = vld [vmem:[#allocation2 + $0x3b0] sm:$0xff]
    %v169 = vld [vmem:[#allocation2 + $0x3b8] sm:$0xff]
    %v170 = vld [vmem:[#allocation2 + $0x3c0] sm:$0xff]
    %v171 = vld [vmem:[#allocation2 + $0x3c8] sm:$0xff]
    %v172 = vld [vmem:[#allocation2 + $0x3d0] sm:$0xff]
    %v173 = vld [vmem:[#allocation2 + $0x3d8] sm:$0xff]
    %v174 = vld [vmem:[#allocation2 + $0x3e0] sm:$0xff]
    %v175 = vld [vmem:[#allocation2 + $0x3e8] sm:$0xff]
    %v176 = vld [vmem:[#allocation2 + $0x3f0] sm:$0xff]
    %v177 = vld [vmem:[#allocation2 + $0x3f8] sm:$0xff]
    %v306 = vunpack.c.l.b16 %v50
    %v307 = vunpack.c.h.b16 %v50
    %v308 = vunpack.c.l.b16 %v51
    %v309 = vunpack.c.h.b16 %v51
    %v310 = vunpack.c.l.b16 %v52
    %v311 = vunpack.c.h.b16 %v52
    %v312 = vunpack.c.l.b16 %v53
    %v313 = vunpack.c.h.b16 %v53
    %v314 = vunpack.c.l.b16 %v54
    %v315 = vunpack.c.h.b16 %v54
    %v316 = vunpack.c.l.b16 %v55
    %v317 = vunpack.c.h.b16 %v55
    %v318 = vunpack.c.l.b16 %v56
    %v319 = vunpack.c.h.b16 %v56
    %v320 = vunpack.c.l.b16 %v57
    %v321 = vunpack.c.h.b16 %v57
    %v322 = vunpack.c.l.b16 %v58
    %v323 = vunpack.c.h.b16 %v58
    %v324 = vunpack.c.l.b16 %v59
    %v325 = vunpack.c.h.b16 %v59
    %v326 = vunpack.c.l.b16 %v60
    %v327 = vunpack.c.h.b16 %v60
    %v328 = vunpack.c.l.b16 %v61
    %v329 = vunpack.c.h.b16 %v61
    %v330 = vunpack.c.l.b16 %v62
    %v331 = vunpack.c.h.b16 %v62
    %v332 = vunpack.c.l.b16 %v63
    %v333 = vunpack.c.h.b16 %v63
    %v334 = vunpack.c.l.b16 %v64
    %v335 = vunpack.c.h.b16 %v64
    %v336 = vunpack.c.l.b16 %v65
    %v337 = vunpack.c.h.b16 %v65
    %v338 = vunpack.c.l.b16 %v66
    %v339 = vunpack.c.h.b16 %v66
    %v340 = vunpack.c.l.b16 %v67
    %v341 = vunpack.c.h.b16 %v67
    %v342 = vunpack.c.l.b16 %v68
    %v343 = vunpack.c.h.b16 %v68
    %v344 = vunpack.c.l.b16 %v69
    %v345 = vunpack.c.h.b16 %v69
    %v346 = vunpack.c.l.b16 %v70
    %v347 = vunpack.c.h.b16 %v70
    %v348 = vunpack.c.l.b16 %v71
    %v349 = vunpack.c.h.b16 %v71
    %v350 = vunpack.c.l.b16 %v72
    %v351 = vunpack.c.h.b16 %v72
    %v352 = vunpack.c.l.b16 %v73
    %v353 = vunpack.c.h.b16 %v73
    %v354 = vunpack.c.l.b16 %v74
    %v355 = vunpack.c.h.b16 %v74
    %v356 = vunpack.c.l.b16 %v75
    %v357 = vunpack.c.h.b16 %v75
    %v358 = vunpack.c.l.b16 %v76
    %v359 = vunpack.c.h.b16 %v76
    %v360 = vunpack.c.l.b16 %v77
    %v361 = vunpack.c.h.b16 %v77
    %v362 = vunpack.c.l.b16 %v78
    %v363 = vunpack.c.h.b16 %v78
    %v364 = vunpack.c.l.b16 %v79
    %v365 = vunpack.c.h.b16 %v79
    %v366 = vunpack.c.l.b16 %v80
    %v367 = vunpack.c.h.b16 %v80
    %v368 = vunpack.c.l.b16 %v81
    %v369 = vunpack.c.h.b16 %v81
    %v370 = vunpack.c.l.b16 %v82
    %v371 = vunpack.c.h.b16 %v82
    %v372 = vunpack.c.l.b16 %v83
    %v373 = vunpack.c.h.b16 %v83
    %v374 = vunpack.c.l.b16 %v84
    %v375 = vunpack.c.h.b16 %v84
    %v376 = vunpack.c.l.b16 %v85
    %v377 = vunpack.c.h.b16 %v85
    %v378 = vunpack.c.l.b16 %v86
    %v379 = vunpack.c.h.b16 %v86
    %v380 = vunpack.c.l.b16 %v87
    %v381 = vunpack.c.h.b16 %v87
    %v382 = vunpack.c.l.b16 %v88
    %v383 = vunpack.c.h.b16 %v88
    %v384 = vunpack.c.l.b16 %v89
    %v385 = vunpack.c.h.b16 %v89
    %v386 = vunpack.c.l.b16 %v90
    %v387 = vunpack.c.h.b16 %v90
    %v388 = vunpack.c.l.b16 %v91
    %v389 = vunpack.c.h.b16 %v91
    %v390 = vunpack.c.l.b16 %v92
    %v391 = vunpack.c.h.b16 %v92
    %v392 = vunpack.c.l.b16 %v93
    %v393 = vunpack.c.h.b16 %v93
    %v394 = vunpack.c.l.b16 %v94
    %v395 = vunpack.c.h.b16 %v94
    %v396 = vunpack.c.l.b16 %v95
    %v397 = vunpack.c.h.b16 %v95
    %v398 = vunpack.c.l.b16 %v96
    %v399 = vunpack.c.h.b16 %v96
    %v400 = vunpack.c.l.b16 %v97
    %v401 = vunpack.c.h.b16 %v97
    %v402 = vunpack.c.l.b16 %v98
    %v403 = vunpack.c.h.b16 %v98
    %v404 = vunpack.c.l.b16 %v99
    %v405 = vunpack.c.h.b16 %v99
    %v406 = vunpack.c.l.b16 %v100
    %v407 = vunpack.c.h.b16 %v100
    %v408 = vunpack.c.l.b16 %v101
    %v409 = vunpack.c.h.b16 %v101
    %v410 = vunpack.c.l.b16 %v102
    %v411 = vunpack.c.h.b16 %v102
    %v412 = vunpack.c.l.b16 %v103
    %v413 = vunpack.c.h.b16 %v103
    %v414 = vunpack.c.l.b16 %v104
    %v415 = vunpack.c.h.b16 %v104
    %v416 = vunpack.c.l.b16 %v105
    %v417 = vunpack.c.h.b16 %v105
    %v418 = vunpack.c.l.b16 %v106
    %v419 = vunpack.c.h.b16 %v106
    %v420 = vunpack.c.l.b16 %v107
    %v421 = vunpack.c.h.b16 %v107
    %v422 = vunpack.c.l.b16 %v108
    %v423 = vunpack.c.h.b16 %v108
    %v424 = vunpack.c.l.b16 %v109
    %v425 = vunpack.c.h.b16 %v109
    %v426 = vunpack.c.l.b16 %v110
    %v427 = vunpack.c.h.b16 %v110
    %v428 = vunpack.c.l.b16 %v111
    %v429 = vunpack.c.h.b16 %v111
    %v430 = vunpack.c.l.b16 %v112
    %v431 = vunpack.c.h.b16 %v112
    %v432 = vunpack.c.l.b16 %v113
    %v433 = vunpack.c.h.b16 %v113
    %v434 = vunpack.c.l.b16 %v114
    %v435 = vunpack.c.h.b16 %v114
    %v436 = vunpack.c.l.b16 %v115
    %v437 = vunpack.c.h.b16 %v115
    %v438 = vunpack.c.l.b16 %v116
    %v439 = vunpack.c.h.b16 %v116
    %v440 = vunpack.c.l.b16 %v117
    %v441 = vunpack.c.h.b16 %v117
    %v442 = vunpack.c.l.b16 %v118
    %v443 = vunpack.c.h.b16 %v118
    %v444 = vunpack.c.l.b16 %v119
    %v445 = vunpack.c.h.b16 %v119
    %v446 = vunpack.c.l.b16 %v120
    %v447 = vunpack.c.h.b16 %v120
    %v448 = vunpack.c.l.b16 %v121
    %v449 = vunpack.c.h.b16 %v121
    %v450 = vunpack.c.l.b16 %v122
    %v451 = vunpack.c.h.b16 %v122
    %v452 = vunpack.c.l.b16 %v123
    %v453 = vunpack.c.h.b16 %v123
    %v454 = vunpack.c.l.b16 %v124
    %v455 = vunpack.c.h.b16 %v124
    %v456 = vunpack.c.l.b16 %v125
    %v457 = vunpack.c.h.b16 %v125
    %v458 = vunpack.c.l.b16 %v126
    %v459 = vunpack.c.h.b16 %v126
    %v460 = vunpack.c.l.b16 %v127
    %v461 = vunpack.c.h.b16 %v127
    %v462 = vunpack.c.l.b16 %v128
    %v463 = vunpack.c.h.b16 %v128
    %v464 = vunpack.c.l.b16 %v129
    %v465 = vunpack.c.h.b16 %v129
    %v466 = vunpack.c.l.b16 %v130
    %v467 = vunpack.c.h.b16 %v130
    %v468 = vunpack.c.l.b16 %v131
    %v469 = vunpack.c.h.b16 %v131
    %v470 = vunpack.c.l.b16 %v132
    %v471 = vunpack.c.h.b16 %v132
    %v472 = vunpack.c.l.b16 %v133
    %v473 = vunpack.c.h.b16 %v133
    %v474 = vunpack.c.l.b16 %v134
    %v475 = vunpack.c.h.b16 %v134
    %v476 = vunpack.c.l.b16 %v135
    %v477 = vunpack.c.h.b16 %v135
    %v478 = vunpack.c.l.b16 %v136
    %v479 = vunpack.c.h.b16 %v136
    %v480 = vunpack.c.l.b16 %v137
    %v481 = vunpack.c.h.b16 %v137
    %v482 = vunpack.c.l.b16 %v138
    %v483 = vunpack.c.h.b16 %v138
    %v484 = vunpack.c.l.b16 %v139
    %v485 = vunpack.c.h.b16 %v139
    %v486 = vunpack.c.l.b16 %v140
    %v487 = vunpack.c.h.b16 %v140
    %v488 = vunpack.c.l.b16 %v141
    %v489 = vunpack.c.h.b16 %v141
    %v490 = vunpack.c.l.b16 %v142
    %v491 = vunpack.c.h.b16 %v142
    %v492 = vunpack.c.l.b16 %v143
    %v493 = vunpack.c.h.b16 %v143
    %v494 = vunpack.c.l.b16 %v144
    %v495 = vunpack.c.h.b16 %v144
    %v496 = vunpack.c.l.b16 %v145
    %v497 = vunpack.c.h.b16 %v145
    %v498 = vunpack.c.l.b16 %v146
    %v499 = vunpack.c.h.b16 %v146
    %v500 = vunpack.c.l.b16 %v147
    %v501 = vunpack.c.h.b16 %v147
    %v502 = vunpack.c.l.b16 %v148
    %v503 = vunpack.c.h.b16 %v148
    %v504 = vunpack.c.l.b16 %v149
    %v505 = vunpack.c.h.b16 %v149
    %v506 = vunpack.c.l.b16 %v150
    %v507 = vunpack.c.h.b16 %v150
    %v508 = vunpack.c.l.b16 %v151
    %v509 = vunpack.c.h.b16 %v151
    %v510 = vunpack.c.l.b16 %v152
    %v511 = vunpack.c.h.b16 %v152
    %v512 = vunpack.c.l.b16 %v153
    %v513 = vunpack.c.h.b16 %v153
    %v514 = vunpack.c.l.b16 %v154
    %v515 = vunpack.c.h.b16 %v154
    %v516 = vunpack.c.l.b16 %v155
    %v517 = vunpack.c.h.b16 %v155
    %v518 = vunpack.c.l.b16 %v156
    %v519 = vunpack.c.h.b16 %v156
    %v520 = vunpack.c.l.b16 %v157
    %v521 = vunpack.c.h.b16 %v157
    %v522 = vunpack.c.l.b16 %v158
    %v523 = vunpack.c.h.b16 %v158
    %v524 = vunpack.c.l.b16 %v159
    %v525 = vunpack.c.h.b16 %v159
    %v526 = vunpack.c.l.b16 %v160
    %v527 = vunpack.c.h.b16 %v160
    %v528 = vunpack.c.l.b16 %v161
    %v529 = vunpack.c.h.b16 %v161
    %v530 = vunpack.c.l.b16 %v162
    %v531 = vunpack.c.h.b16 %v162
    %v532 = vunpack.c.l.b16 %v163
    %v533 = vunpack.c.h.b16 %v163
    %v534 = vunpack.c.l.b16 %v164
    %v535 = vunpack.c.h.b16 %v164
    %v536 = vunpack.c.l.b16 %v165
    %v537 = vunpack.c.h.b16 %v165
    %v538 = vunpack.c.l.b16 %v166
    %v539 = vunpack.c.h.b16 %v166
    %v540 = vunpack.c.l.b16 %v167
    %v541 = vunpack.c.h.b16 %v167
    %v542 = vunpack.c.l.b16 %v168
    %v543 = vunpack.c.h.b16 %v168
    %v544 = vunpack.c.l.b16 %v169
    %v545 = vunpack.c.h.b16 %v169
    %v546 = vunpack.c.l.b16 %v170
    %v547 = vunpack.c.h.b16 %v170
    %v548 = vunpack.c.l.b16 %v171
    %v549 = vunpack.c.h.b16 %v171
    %v550 = vunpack.c.l.b16 %v172
    %v551 = vunpack.c.h.b16 %v172
    %v552 = vunpack.c.l.b16 %v173
    %v553 = vunpack.c.h.b16 %v173
    %v554 = vunpack.c.l.b16 %v174
    %v555 = vunpack.c.h.b16 %v174
    %v556 = vunpack.c.l.b16 %v175
    %v557 = vunpack.c.h.b16 %v175
    %v558 = vunpack.c.l.b16 %v176
    %v559 = vunpack.c.h.b16 %v176
    %v560 = vunpack.c.l.b16 %v177
    %v561 = vunpack.c.h.b16 %v177
    %v562 = vpack.c.b16 %v308, %v306
    %v563 = vpack.c.b16 %v309, %v307
    %v564 = vpack.c.b16 %v312, %v310
    %v565 = vpack.c.b16 %v313, %v311
    %v566 = vpack.c.b16 %v316, %v314
    %v567 = vpack.c.b16 %v317, %v315
    %v568 = vpack.c.b16 %v320, %v318
    %v569 = vpack.c.b16 %v321, %v319
    %v570 = vpack.c.b16 %v324, %v322
    %v571 = vpack.c.b16 %v325, %v323
    %v572 = vpack.c.b16 %v328, %v326
    %v573 = vpack.c.b16 %v329, %v327
    %v574 = vpack.c.b16 %v332, %v330
    %v575 = vpack.c.b16 %v333, %v331
    %v576 = vpack.c.b16 %v336, %v334
    %v577 = vpack.c.b16 %v337, %v335
    %v578 = vpack.c.b16 %v340, %v338
    %v579 = vpack.c.b16 %v341, %v339
    %v580 = vpack.c.b16 %v344, %v342
    %v581 = vpack.c.b16 %v345, %v343
    %v582 = vpack.c.b16 %v348, %v346
    %v583 = vpack.c.b16 %v349, %v347
    %v584 = vpack.c.b16 %v352, %v350
    %v585 = vpack.c.b16 %v353, %v351
    %v586 = vpack.c.b16 %v356, %v354
    %v587 = vpack.c.b16 %v357, %v355
    %v588 = vpack.c.b16 %v360, %v358
    %v589 = vpack.c.b16 %v361, %v359
    %v590 = vpack.c.b16 %v364, %v362
    %v591 = vpack.c.b16 %v365, %v363
    %v592 = vpack.c.b16 %v368, %v366
    %v593 = vpack.c.b16 %v369, %v367
    %v594 = vpack.c.b16 %v372, %v370
    %v595 = vpack.c.b16 %v373, %v371
    %v596 = vpack.c.b16 %v376, %v374
    %v597 = vpack.c.b16 %v377, %v375
    %v598 = vpack.c.b16 %v380, %v378
    %v599 = vpack.c.b16 %v381, %v379
    %v600 = vpack.c.b16 %v384, %v382
    %v601 = vpack.c.b16 %v385, %v383
    %v602 = vpack.c.b16 %v388, %v386
    %v603 = vpack.c.b16 %v389, %v387
    %v604 = vpack.c.b16 %v392, %v390
    %v605 = vpack.c.b16 %v393, %v391
    %v606 = vpack.c.b16 %v396, %v394
    %v607 = vpack.c.b16 %v397, %v395
    %v608 = vpack.c.b16 %v400, %v398
    %v609 = vpack.c.b16 %v401, %v399
    %v610 = vpack.c.b16 %v404, %v402
    %v611 = vpack.c.b16 %v405, %v403
    %v612 = vpack.c.b16 %v408, %v406
    %v613 = vpack.c.b16 %v409, %v407
    %v614 = vpack.c.b16 %v412, %v410
    %v615 = vpack.c.b16 %v413, %v411
    %v616 = vpack.c.b16 %v416, %v414
    %v617 = vpack.c.b16 %v417, %v415
    %v618 = vpack.c.b16 %v420, %v418
    %v619 = vpack.c.b16 %v421, %v419
    %v620 = vpack.c.b16 %v424, %v422
    %v621 = vpack.c.b16 %v425, %v423
    %v622 = vpack.c.b16 %v428, %v426
    %v623 = vpack.c.b16 %v429, %v427
    %v624 = vpack.c.b16 %v432, %v430
    %v625 = vpack.c.b16 %v433, %v431
    %v626 = vpack.c.b16 %v436, %v434
    %v627 = vpack.c.b16 %v437, %v435
    %v628 = vpack.c.b16 %v440, %v438
    %v629 = vpack.c.b16 %v441, %v439
    %v630 = vpack.c.b16 %v444, %v442
    %v631 = vpack.c.b16 %v445, %v443
    %v632 = vpack.c.b16 %v448, %v446
    %v633 = vpack.c.b16 %v449, %v447
    %v634 = vpack.c.b16 %v452, %v450
    %v635 = vpack.c.b16 %v453, %v451
    %v636 = vpack.c.b16 %v456, %v454
    %v637 = vpack.c.b16 %v457, %v455
    %v638 = vpack.c.b16 %v460, %v458
    %v639 = vpack.c.b16 %v461, %v459
    %v640 = vpack.c.b16 %v464, %v462
    %v641 = vpack.c.b16 %v465, %v463
    %v642 = vpack.c.b16 %v468, %v466
    %v643 = vpack.c.b16 %v469, %v467
    %v644 = vpack.c.b16 %v472, %v470
    %v645 = vpack.c.b16 %v473, %v471
    %v646 = vpack.c.b16 %v476, %v474
    %v647 = vpack.c.b16 %v477, %v475
    %v648 = vpack.c.b16 %v480, %v478
    %v649 = vpack.c.b16 %v481, %v479
    %v650 = vpack.c.b16 %v484, %v482
    %v651 = vpack.c.b16 %v485, %v483
    %v652 = vpack.c.b16 %v488, %v486
    %v653 = vpack.c.b16 %v489, %v487
    %v654 = vpack.c.b16 %v492, %v490
    %v655 = vpack.c.b16 %v493, %v491
    %v656 = vpack.c.b16 %v496, %v494
    %v657 = vpack.c.b16 %v497, %v495
    %v658 = vpack.c.b16 %v500, %v498
    %v659 = vpack.c.b16 %v501, %v499
    %v660 = vpack.c.b16 %v504, %v502
    %v661 = vpack.c.b16 %v505, %v503
    %v662 = vpack.c.b16 %v508, %v506
    %v663 = vpack.c.b16 %v509, %v507
    %v664 = vpack.c.b16 %v512, %v510
    %v665 = vpack.c.b16 %v513, %v511
    %v666 = vpack.c.b16 %v516, %v514
    %v667 = vpack.c.b16 %v517, %v515
    %v668 = vpack.c.b16 %v520, %v518
    %v669 = vpack.c.b16 %v521, %v519
    %v670 = vpack.c.b16 %v524, %v522
    %v671 = vpack.c.b16 %v525, %v523
    %v672 = vpack.c.b16 %v528, %v526
    %v673 = vpack.c.b16 %v529, %v527
    %v674 = vpack.c.b16 %v532, %v530
    %v675 = vpack.c.b16 %v533, %v531
    %v676 = vpack.c.b16 %v536, %v534
    %v677 = vpack.c.b16 %v537, %v535
    %v678 = vpack.c.b16 %v540, %v538
    %v679 = vpack.c.b16 %v541, %v539
    %v680 = vpack.c.b16 %v544, %v542
    %v681 = vpack.c.b16 %v545, %v543
    %v682 = vpack.c.b16 %v548, %v546
    %v683 = vpack.c.b16 %v549, %v547
    %v684 = vpack.c.b16 %v552, %v550
    %v685 = vpack.c.b16 %v553, %v551
    %v686 = vpack.c.b16 %v556, %v554
    %v687 = vpack.c.b16 %v557, %v555
    %v688 = vpack.c.b16 %v560, %v558
    %v689 = vpack.c.b16 %v561, %v559
    %818 = vmatprep.subr.bf16.mxu0 %v563
    %819 = vmatpush1.bf16.msra.mxu0 %v562
    %820 = vmatprep.subr.bf16.mxu0 %v565
    %821 = vmatpush1.bf16.msra.mxu0 %v564
    %822 = vmatprep.subr.bf16.mxu0 %v567
    %823 = vmatpush1.bf16.msra.mxu0 %v566
    %824 = vmatprep.subr.bf16.mxu0 %v569
    %825 = vmatpush1.bf16.msra.mxu0 %v568
    %826 = vmatprep.subr.bf16.mxu0 %v571
    %827 = vmatpush1.bf16.msra.mxu0 %v570
    %828 = vmatprep.subr.bf16.mxu0 %v573
    %829 = vmatpush1.bf16.msra.mxu0 %v572
    %830 = vmatprep.subr.bf16.mxu0 %v575
    %831 = vmatpush1.bf16.msra.mxu0 %v574
    %832 = vmatprep.subr.bf16.mxu0 %v577
    %833 = vmatpush1.bf16.msra.mxu0 %v576
    %834 = vmatprep.subr.bf16.mxu0 %v579
    %835 = vmatpush1.bf16.msra.mxu0 %v578
    %836 = vmatprep.subr.bf16.mxu0 %v581
    %837 = vmatpush1.bf16.msra.mxu0 %v580
    %838 = vmatprep.subr.bf16.mxu0 %v583
    %839 = vmatpush1.bf16.msra.mxu0 %v582
    %840 = vmatprep.subr.bf16.mxu0 %v585
    %841 = vmatpush1.bf16.msra.mxu0 %v584
    %842 = vmatprep.subr.bf16.mxu0 %v587
    %843 = vmatpush1.bf16.msra.mxu0 %v586
    %844 = vmatprep.subr.bf16.mxu0 %v589
    %845 = vmatpush1.bf16.msra.mxu0 %v588
    %846 = vmatprep.subr.bf16.mxu0 %v591
    %847 = vmatpush1.bf16.msra.mxu0 %v590
    %848 = vmatprep.subr.bf16.mxu0 %v593
    %849 = vmatpush1.bf16.msra.mxu0 %v592
    %850 = vmatprep.mubr.bf16.mxu0 %v43
    %851 = vmatmul.mubr.bf16.gmra.mrb[0].mxu0 %v42
    %v852 = vpop.f32.mrb[0].mxu0
    %v853 = vadd.f32 0.0, %v852
    %v854 = vpop.f32.mrb[0].mxu0
    %v855 = vadd.f32 0.0, %v854
    %v856 = vpop.f32.mrb[0].mxu0
    %v857 = vpop.f32.mrb[0].mxu0
    %858 = vdwg.mxu0
    %859 = vmatprep.subr.bf16.mxu0 %v595
    %860 = vmatpush1.bf16.msra.mxu0 %v594
    %861 = vmatprep.subr.bf16.mxu0 %v597
    %862 = vmatpush1.bf16.msra.mxu0 %v596
    %863 = vmatprep.subr.bf16.mxu0 %v599
    %864 = vmatpush1.bf16.msra.mxu0 %v598
    %865 = vmatprep.subr.bf16.mxu0 %v601
    %866 = vmatpush1.bf16.msra.mxu0 %v600
    %867 = vmatprep.subr.bf16.mxu0 %v603
    %868 = vmatpush1.bf16.msra.mxu0 %v602
    %869 = vmatprep.subr.bf16.mxu0 %v605
    %870 = vmatpush1.bf16.msra.mxu0 %v604
    %871 = vmatprep.subr.bf16.mxu0 %v607
    %872 = vmatpush1.bf16.msra.mxu0 %v606
    %873 = vmatprep.subr.bf16.mxu0 %v609
    %874 = vmatpush1.bf16.msra.mxu0 %v608
    %875 = vmatprep.subr.bf16.mxu0 %v611
    %876 = vmatpush1.bf16.msra.mxu0 %v610
    %877 = vmatprep.subr.bf16.mxu0 %v613
    %878 = vmatpush1.bf16.msra.mxu0 %v612
    %879 = vmatprep.subr.bf16.mxu0 %v615
    %880 = vmatpush1.bf16.msra.mxu0 %v614
    %881 = vmatprep.subr.bf16.mxu0 %v617
    %882 = vmatpush1.bf16.msra.mxu0 %v616
    %883 = vmatprep.subr.bf16.mxu0 %v619
    %884 = vmatpush1.bf16.msra.mxu0 %v618
    %885 = vmatprep.subr.bf16.mxu0 %v621
    %886 = vmatpush1.bf16.msra.mxu0 %v620
    %887 = vmatprep.subr.bf16.mxu0 %v623
    %888 = vmatpush1.bf16.msra.mxu0 %v622
    %889 = vmatprep.subr.bf16.mxu0 %v625
    %890 = vmatpush1.bf16.msra.mxu0 %v624
    %891 = vmatprep.mubr.bf16.mxu0 %v45
    %892 = vmatmul.mubr.bf16.gmra.mrb[0].mxu0 %v44
    %v893 = vpop.f32.mrb[0].mxu0
    %v894 = vadd.f32 %v853, %v893
    %v895 = vpop.f32.mrb[0].mxu0
    %v896 = vadd.f32 %v855, %v895
    %v897 = vpop.f32.mrb[0].mxu0
    %v898 = vpop.f32.mrb[0].mxu0
    %899 = vdwg.mxu0
    %900 = vmatprep.subr.bf16.mxu0 %v627
    %901 = vmatpush1.bf16.msra.mxu0 %v626
    %902 = vmatprep.subr.bf16.mxu0 %v629
    %903 = vmatpush1.bf16.msra.mxu0 %v628
    %904 = vmatprep.subr.bf16.mxu0 %v631
    %905 = vmatpush1.bf16.msra.mxu0 %v630
    %906 = vmatprep.subr.bf16.mxu0 %v633
    %907 = vmatpush1.bf16.msra.mxu0 %v632
    %908 = vmatprep.subr.bf16.mxu0 %v635
    %909 = vmatpush1.bf16.msra.mxu0 %v634
    %910 = vmatprep.subr.bf16.mxu0 %v637
    %911 = vmatpush1.bf16.msra.mxu0 %v636
    %912 = vmatprep.subr.bf16.mxu0 %v639
    %913 = vmatpush1.bf16.msra.mxu0 %v638
    %914 = vmatprep.subr.bf16.mxu0 %v641
    %915 = vmatpush1.bf16.msra.mxu0 %v640
    %916 = vmatprep.subr.bf16.mxu0 %v643
    %917 = vmatpush1.bf16.msra.mxu0 %v642
    %918 = vmatprep.subr.bf16.mxu0 %v645
    %919 = vmatpush1.bf16.msra.mxu0 %v644
    %920 = vmatprep.subr.bf16.mxu0 %v647
    %921 = vmatpush1.bf16.msra.mxu0 %v646
    %922 = vmatprep.subr.bf16.mxu0 %v649
    %923 = vmatpush1.bf16.msra.mxu0 %v648
    %924 = vmatprep.subr.bf16.mxu0 %v651
    %925 = vmatpush1.bf16.msra.mxu0 %v650
    %926 = vmatprep.subr.bf16.mxu0 %v653
    %927 = vmatpush1.bf16.msra.mxu0 %v652
    %928 = vmatprep.subr.bf16.mxu0 %v655
    %929 = vmatpush1.bf16.msra.mxu0 %v654
    %930 = vmatprep.subr.bf16.mxu0 %v657
    %931 = vmatpush1.bf16.msra.mxu0 %v656
    %932 = vmatprep.mubr.bf16.mxu0 %v47
    %933 = vmatmul.mubr.bf16.gmra.mrb[0].mxu0 %v46
    %v934 = vpop.f32.mrb[0].mxu0
    %v935 = vadd.f32 %v894, %v934
    %v936 = vpop.f32.mrb[0].mxu0
    %v937 = vadd.f32 %v896, %v936
    %v938 = vpop.f32.mrb[0].mxu0
    %v939 = vpop.f32.mrb[0].mxu0
    %940 = vdwg.mxu0
    %941 = vmatprep.subr.bf16.mxu0 %v659
    %942 = vmatpush1.bf16.msra.mxu0 %v658
    %943 = vmatprep.subr.bf16.mxu0 %v661
    %944 = vmatpush1.bf16.msra.mxu0 %v660
    %945 = vmatprep.subr.bf16.mxu0 %v663
    %946 = vmatpush1.bf16.msra.mxu0 %v662
    %947 = vmatprep.subr.bf16.mxu0 %v665
    %948 = vmatpush1.bf16.msra.mxu0 %v664
    %949 = vmatprep.subr.bf16.mxu0 %v667
    %950 = vmatpush1.bf16.msra.mxu0 %v666
    %951 = vmatprep.subr.bf16.mxu0 %v669
    %952 = vmatpush1.bf16.msra.mxu0 %v668
    %953 = vmatprep.subr.bf16.mxu0 %v671
    %954 = vmatpush1.bf16.msra.mxu0 %v670
    %955 = vmatprep.subr.bf16.mxu0 %v673
    %956 = vmatpush1.bf16.msra.mxu0 %v672
    %957 = vmatprep.subr.bf16.mxu0 %v675
    %958 = vmatpush1.bf16.msra.mxu0 %v674
    %959 = vmatprep.subr.bf16.mxu0 %v677
    %960 = vmatpush1.bf16.msra.mxu0 %v676
    %961 = vmatprep.subr.bf16.mxu0 %v679
    %962 = vmatpush1.bf16.msra.mxu0 %v678
    %963 = vmatprep.subr.bf16.mxu0 %v681
    %964 = vmatpush1.bf16.msra.mxu0 %v680
    %965 = vmatprep.subr.bf16.mxu0 %v683
    %966 = vmatpush1.bf16.msra.mxu0 %v682
    %967 = vmatprep.subr.bf16.mxu0 %v685
    %968 = vmatpush1.bf16.msra.mxu0 %v684
    %969 = vmatprep.subr.bf16.mxu0 %v687
    %970 = vmatpush1.bf16.msra.mxu0 %v686
    %971 = vmatprep.subr.bf16.mxu0 %v689
    %972 = vmatpush1.bf16.msra.mxu0 %v688
    %973 = vmatprep.mubr.bf16.mxu0 %v49
    %974 = vmatmul.mubr.bf16.gmra.mrb[0].mxu0 %v48
    %v975 = vpop.f32.mrb[0].mxu0
    %v976 = vadd.f32 %v935, %v975
    %v977 = vpop.f32.mrb[0].mxu0
    %v978 = vadd.f32 %v937, %v977
    %v979 = vpop.f32.mrb[0].mxu0
    %v980 = vpop.f32.mrb[0].mxu0
    %981 = vdwg.mxu0
    %p982 = scmp.eq.s32.totalorder 0, 0
    // Predicated region
    $region22: #{bengali_classifier_forward.1} parent=1 // pred_check
      %p983 = pneg %p982
    $region23: #{bengali_classifier_forward.1} parent=1 // pred_check_branch
      %985 = sbr.rel (%p983) target = $region25
    $region24: #{bengali_classifier_forward.1} parent=1 // pred_region
      %986 = vst [vmem:[#allocation5] sm:$0xff] %v976
      %987 = vst [vmem:[#allocation5 + $0x8] sm:$0xff] %v978
    $region25: #{bengali_classifier_forward.1} parent=1 // pred_fallthru
      _
    %p988 = scmp.gt.s32.totalorder 0, 0
    // Predicated region
    $region26: #{bengali_classifier_forward.1} parent=1 // pred_check
      %p989 = pneg %p988
    $region27: #{bengali_classifier_forward.1} parent=1 // pred_check_branch
      %991 = sbr.rel (%p989) target = $region29
    $region28: #{bengali_classifier_forward.1} parent=1 // pred_region
      %v992 = vld [vmem:[#allocation5] sm:$0xff]
      %v993 = vld [vmem:[#allocation5 + $0x8] sm:$0xff]
      %v994 = vadd.f32 %v992, %v976
      %v995 = vadd.f32 %v993, %v978
      %996 = vst [vmem:[#allocation5] sm:$0xff] %v994
      %997 = vst [vmem:[#allocation5 + $0x8] sm:$0xff] %v995
    $region29: #{bengali_classifier_forward.1} parent=1 // pred_fallthru
      _
    // Predicated region
    $region30: #{bengali_classifier_forward.1} parent=1 // pred_check
      %p998 = pneg %p982
    $region31: #{bengali_classifier_forward.1} parent=1 // pred_check_branch
      %1000 = sbr.rel (%p998) target = $region33
    $region32: #{bengali_classifier_forward.1} parent=1 // pred_region
      %v1001 = vld [vmem:[#allocation5] sm:$0xff]
      %v1002 = vld [vmem:[#allocation5 + $0x8] sm:$0xff]
      %v1003 = vld [vmem:[%s2] sm:$0x3]
      %v1005 = vlaneseq
      %v1006 = vshrl.u32 %v1005, 7
      %v1007 = vsub.s32 0, %v1006
      %v1008 = vrot.slane %v1003, %v1007
      %v1009 = vlaneseq
      %v1010 = vshrl.u32 %v1009, 7
      %v1011 = vsub.s32 1, %v1010
      %v1012 = vrot.slane %v1003, %v1011
      %v1015 = vadd.f32 %v1001, %v1008
      %v1016 = vadd.f32 %v1002, %v1012
      %1017 = vst [vmem:[#allocation5] sm:$0xff] %v1015
      %1018 = vst [vmem:[#allocation5 + $0x8] sm:$0xff] %v1016
      %v1019 = vlaneseq
      %v1020 = vand.u32 %v1019, 127
      %v1021 = vadd.s32 %v1020, 128
      %v1022 = vlaneseq
      %v1023 = vshrl.u32 %v1022, 7
      %vm1024 = vcmp.lt.s32.totalorder %v1023, 8
      %vm1025 = vcmp.ge.s32.totalorder %v1020, 0
      %vm1026 = vcmp.ge.s32.totalorder %v1021, 0
      %vm1027 = vcmp.lt.s32.totalorder %v1020, 168
      %vm1028 = vcmp.lt.s32.totalorder %v1021, 168
      %vm1029 = vmand %vm1025, %vm1027
      %vm1030 = vmand %vm1026, %vm1028
      %v1031 = vsel %vm1029, %v1015, -inf
      %v1032 = vsel %vm1030, %v1016, -inf
      %v1033 = vmax.f32 %v1031, %v1032
      %1034 = vmax.xlane.f32.xlu0 %v1033
      %v1035 = vpop.xlane.xlu0 %1034
      %vm1036 = vcmp.ge.s32.totalorder %v1020, 168
      %vm1037 = vcmp.ge.s32.totalorder %v1021, 168
      %vm1038 = vcmp.lt.s32.totalorder %v1020, 179
      %vm1039 = vcmp.lt.s32.totalorder %v1021, 179
      %vm1040 = vmand %vm1036, %vm1038
      %vm1041 = vmand %vm1037, %vm1039
      %v1042 = vsel %vm1040, %v1015, -inf
      %v1043 = vsel %vm1041, %v1016, -inf
      %v1044 = vmax.f32 %v1042, %v1043
      %1045 = vmax.xlane.f32.xlu0 %v1044
      %v1046 = vpop.xlane.xlu0 %1045
      %vm1047 = vcmp.ge.s32.totalorder %v1020, 179
      %vm1048 = vcmp.ge.s32.totalorder %v1021, 179
      %vm1049 = vcmp.lt.s32.totalorder %v1020, 186
      %vm1050 = vcmp.lt.s32.totalorder %v1021, 186
      %vm1051 = vmand %vm1047, %vm1049
      %vm1052 = vmand %vm1048, %vm1050
      %v1053 = vsel %vm1051, %v1015, -inf
      %v1054 = vsel %vm1052, %v1016, -inf
      %v1055 = vmax.f32 %v1053, %v1054
      %1056 = vmax.xlane.f32.xlu0 %v1055
      %v1057 = vpop.xlane.xlu0 %1056
      %v1058 = vsel %vm1038, %v1046, %v1057
      %v1059 = vsel %vm1039, %v1046, %v1057
      %v1060 = vsel %vm1027, %v1035, %v1058
      %v1061 = vsel %vm1028, %v1035, %v1059
      %v1062 = vsub.f32 %v1015, %v1060
      %v1063 = vsub.f32 %v1016, %v1061
      %v1064 = vsel %vm1049, %v1062, -inf
      %v1065 = vsel %vm1050, %v1063, -inf
      %v1066 = vmul.f32 %v1064, 1.442695
      %v1067 = vpow.pop %v1066
      %v1068 = vmul.f32 %v1065, 1.442695
      %v1069 = vpow.pop %v1068
      %v1070 = vld [vmem:[%s3] sm:$0xff]
      %v1071 = vsel %vm1029, %v1067, 0.0
      %v1072 = vsel %vm1030, %v1069, 0.0
      %v1073 = vadd.f32 %v1071, %v1072
      %1074 = vadd.xlane.f32.xlu0 %v1073
      %v1075 = vpop.xlane.xlu0 %1074
      %v1076 = vlog2.pop %v1075
      %v1077 = vmul.f32 %v1076, 0.6931472
      %v1078 = vadd.f32 %v1035, %v1077
      %1079 = vset.pattern.permute.xlu0 0
      %1080 = vperm.xlu0 %1079, %v1070
      %v1081 = vpop.permute.xlu0 %1080
      %vm1082 = vcmp.eq.s32.totalorder %v1020, %v1081
      %vm1083 = vcmp.eq.s32.totalorder %v1021, %v1081
      %v1084 = vsel %vm1082, %v1015, 0.0
      %v1085 = vsel %vm1083, %v1016, 0.0
      %v1086 = vadd.f32 %v1084, %v1085
      %1087 = vadd.xlane.f32.xlu0 %v1086
      %v1088 = vpop.xlane.xlu0 %1087
      %v1089 = vsub.f32 %v1078, %v1088
      %v1090 = vsel %vm1024, %v1089, 0.0
      %v1091 = vrot.slane %v1090, 4
      %v1092 = vadd.f32 %v1090, %v1091
      %v1093 = vrot.slane %v1092, 2
      %v1094 = vadd.f32 %v1092, %v1093
      %v1095 = vrot.slane %v1094, 1
      %v1096 = vadd.f32 %v1094, %v1095
      %v1097 = vmul.f32 %v1096, 0.125
      %vm1098 = vcmp.eq.f32.partialorder %v1015, %v1035
      %vm1099 = vcmp.eq.f32.partialorder %v1016, %v1035
      %vm1100 = vmand %vm1029, %vm1098
      %vm1101 = vmand %vm1030, %vm1099
      %v1102 = vsel %vm1100, %v1020, 256
      %v1103 = vsel %vm1101, %v1021, 256
      %vm1104 = vcmp.lt.s32.totalorder %v1102, %v1103
      %v1105 = vsel %vm1104, %v1102, %v1103
      %v1106 = vand.u32 %v1105, 65535
      %v1107 = vshra.s32 %v1105, 16
      %v1108 = vcvt.s32.f32 %v1106
      %v1109 = vcvt.s32.f32 %v1107
      %1110 = vmin.xlane.f32.xlu0 %v1109
      %v1111 = vpop.xlane.xlu0 %1110
      %vm1112 = vcmp.eq.f32.partialorder %v1109, %v1111
      %v1113 = vsel %vm1112, %v1108, inf
      %1114 = vmin.xlane.f32.xlu0 %v1113
      %v1115 = vpop.xlane.xlu0 %1114
      %v1116 = vcvt.f32.s32 %v1115
      %v1117 = vcvt.f32.s32 %v1111
      %v1118 = vshll.u32 %v1117, 16
      %v1119 = vadd.s32 %v1118, %v1116
      %vm1120 = vcmp.eq.s32.totalorder %v1119, %v1070
      %vm1121 = vmand %vm1024, %vm1120
      %v1122 = vsel %vm1121, 1.0, 0.0
      %vm1123 = vcmask 7168
      %v1124 = vsel %vm1123, %v1122, 0.0
      %v1125 = vrot.slane %v1124, 4
      %v1126 = vadd.f32 %v1124, %v1125
      %v1127 = vrot.slane %v1126, 2
      %v1128 = vadd.f32 %v1126, %v1127
      %v1129 = vrot.slane %v1128, 1
      %v1130 = vadd.f32 %v1128, %v1129
      %v1131 = vmul.f32 %v1130, 0.125
      %v1132 = vsel %vm1040, %v1067, 0.0
      %v1133 = vsel %vm1041, %v1069, 0.0
      %v1134 = vadd.f32 %v1132, %v1133
      %1135 = vadd.xlane.f32.xlu0 %v1134
      %v1136 = vpop.xlane.xlu0 %1135
      %v1137 = vlog2.pop %v1136
      %v1138 = vmul.f32 %v1137, 0.6931472
      %v1139 = vadd.f32 %v1046, %v1138
      %1140 = vset.pattern.permute.xlu0 1
      %1141 = vperm.xlu0 %1140, %v1070
      %v1142 = vpop.permute.xlu0 %1141
      %vm1143 = vcmp.eq.s32.totalorder %v1020, %v1142
      %vm1144 = vcmp.eq.s32.totalorder %v1021, %v1142
      %v1145 = vsel %vm1143, %v1015, 0.0
      %v1146 = vsel %vm1144, %v1016, 0.0
      %v1147 = vadd.f32 %v1145, %v1146
      %1148 = vadd.xlane.f32.xlu0 %v1147
      %v1149 = vpop.xlane.xlu0 %1148
      %v1150 = vsub.f32 %v1139, %v1149
      %v1151 = vsel %vm1024, %v1150, 0.0
      %v1152 = vrot.slane %v1151, 4
      %v1153 = vadd.f32 %v1151, %v1152
      %v1154 = vrot.slane %v1153, 2
      %v1155 = vadd.f32 %v1153, %v1154
      %v1156 = vrot.slane %v1155, 1
      %v1157 = vadd.f32 %v1155, %v1156
      %v1158 = vmul.f32 %v1157, 0.125
      %vm1159 = vcmp.eq.f32.partialorder %v1015, %v1046
      %vm1160 = vcmp.eq.f32.partialorder %v1016, %v1046
      %vm1161 = vmand %vm1040, %vm1159
      %vm1162 = vmand %vm1041, %vm1160
      %v1163 = vsel %vm1161, %v1020, 256
      %v1164 = vsel %vm1162, %v1021, 256
      %vm1165 = vcmp.lt.s32.totalorder %v1163, %v1164
      %v1166 = vsel %vm1165, %v1163, %v1164
      %v1167 = vand.u32 %v1166, 65535
      %v1168 = vshra.s32 %v1166, 16
      %v1169 = vcvt.s32.f32 %v1167
      %v1170 = vcvt.s32.f32 %v1168
      %1171 = vmin.xlane.f32.xlu0 %v1170
      %v1172 = vpop.xlane.xlu0 %1171
      %vm1173 = vcmp.eq.f32.partialorder %v1170, %v1172
      %v1174 = vsel %vm1173, %v1169, inf
      %1175 = vmin.xlane.f32.xlu0 %v1174
      %v1176 = vpop.xlane.xlu0 %1175
      %v1177 = vcvt.f32.s32 %v1176
      %v1178 = vcvt.f32.s32 %v1172
      %v1179 = vshll.u32 %v1178, 16
      %v1180 = vadd.s32 %v1179, %v1177
      %vm1181 = vcmp.eq.s32.totalorder %v1180, %v1070
      %vm1182 = vmand %vm1024, %vm1181
      %v1183 = vsel %vm1182, 1.0, 0.0
      %vm1184 = vcmask 15368
      %v1185 = vsel %vm1184, %v1183, 0.0
      %v1186 = vrot.slane %v1185, 4
      %v1187 = vadd.f32 %v1185, %v1186
      %v1188 = vrot.slane %v1187, 2
      %v1189 = vadd.f32 %v1187, %v1188
      %v1190 = vrot.slane %v1189, 1
      %v1191 = vadd.f32 %v1189, %v1190
      %v1192 = vmul.f32 %v1191, 0.125
      %v1193 = vsel %vm1051, %v1067, 0.0
      %v1194 = vsel %vm1052, %v1069, 0.0
      %v1195 = vadd.f32 %v1193, %v1194
      %1196 = vadd.xlane.f32.xlu0 %v1195
      %v1197 = vpop.xlane.xlu0 %1196
      %v1198 = vlog2.pop %v1197
      %v1199 = vmul.f32 %v1198, 0.6931472
      %v1200 = vadd.f32 %v1057, %v1199
      %1201 = vset.pattern.permute.xlu0 2
      %1202 = vperm.xlu0 %1201, %v1070
      %v1203 = vpop.permute.xlu0 %1202
      %vm1204 = vcmp.eq.s32.totalorder %v1020, %v1203
      %vm1205 = vcmp.eq.s32.totalorder %v1021, %v1203
      %v1206 = vsel %vm1204, %v1015, 0.0
      %v1207 = vsel %vm1205, %v1016, 0.0
      %v1208 = vadd.f32 %v1206, %v1207
      %1209 = vadd.xlane.f32.xlu0 %v1208
      %v1210 = vpop.xlane.xlu0 %1209
      %v1211 = vsub.f32 %v1200, %v1210
      %v1212 = vsel %vm1024, %v1211, 0.0
      %v1213 = vrot.slane %v1212, 4
      %v1214 = vadd.f32 %v1212, %v1213
      %v1215 = vrot.slane %v1214, 2
      %v1216 = vadd.f32 %v1214, %v1215
      %v1217 = vrot.slane %v1216, 1
      %v1218 = vadd.f32 %v1216, %v1217
      %v1219 = vmul.f32 %v1218, 0.125
      %vm1220 = vcmp.eq.f32.partialorder %v1015, %v1057
      %vm1221 = vcmp.eq.f32.partialorder %v1016, %v1057
      %vm1222 = vmand %vm1051, %vm1220
      %vm1223 = vmand %vm1052, %vm1221
      %v1224 = vsel %vm1222, %v1020, 256
      %v1225 = vsel %vm1223, %v1021, 256
      %vm1226 = vcmp.lt.s32.totalorder %v1224, %v1225
      %v1227 = vsel %vm1226, %v1224, %v1225
      %v1228 = vand.u32 %v1227, 65535
      %v1229 = vshra.s32 %v1227, 16
      %v1230 = vcvt.s32.f32 %v1228
      %v1231 = vcvt.s32.f32 %v1229
      %1232 = vmin.xlane.f32.xlu0 %v1231
      %v1233 = vpop.xlane.xlu0 %1232
      %vm1234 = vcmp.eq.f32.partialorder %v1231, %v1233
      %v1235 = vsel %vm1234, %v1230, inf
      %1236 = vmin.xlane.f32.xlu0 %v1235
      %v1237 = vpop.xlane.xlu0 %1236
      %v1238 = vcvt.f32.s32 %v1237
      %v1239 = vcvt.f32.s32 %v1233
      %v1240 = vshll.u32 %v1239, 16
      %v1241 = vadd.s32 %v1240, %v1238
      %vm1242 = vcmp.eq.s32.totalorder %v1241, %v1070
      %vm1243 = vmand %vm1024, %vm1242
      %v1244 = vsel %vm1243, 1.0, 0.0
      %vm1245 = vcmask 23568
      %v1246 = vsel %vm1245, %v1244, 0.0
      %v1247 = vrot.slane %v1246, 4
      %v1248 = vadd.f32 %v1246, %v1247
      %v1249 = vrot.slane %v1248, 2
      %v1250 = vadd.f32 %v1248, %v1249
      %v1251 = vrot.slane %v1250, 1
      %v1252 = vadd.f32 %v1250, %v1251
      %v1253 = vmul.f32 %v1252, 0.125
      %v1254 = vadd.f32 %v1097, %v1158
      %v1255 = vadd.f32 %v1254, %v1219
      %vm1256 = vcmp.eq.s32.totalorder %v1020, 0
      %v1257 = vsel %vm1256, %v1097, 0.0
      %vm1258 = vcmp.eq.s32.totalorder %v1020, 1
      %v1259 = vsel %vm1258, %v1158, %v1257
      %vm1260 = vcmp.eq.s32.totalorder %v1020, 2
      %v1261 = vsel %vm1260, %v1219, %v1259
      %vm1262 = vcmp.eq.s32.totalorder %v1020, 3
      %1264 = vset.pattern.permute.xlu0 0
      %1265 = vperm.xlu0 %1264, %v1131
      %v1266 = vpop.permute.xlu0 %1265
      %v1268 = vsel %vm1262, %v1266, %v1261
      %vm1269 = vcmp.eq.s32.totalorder %v1020, 4
      %1271 = vset.pattern.permute.xlu0 1
      %1272 = vperm.xlu0 %1271, %v1192
      %v1273 = vpop.permute.xlu0 %1272
      %v1275 = vsel %vm1269, %v1273, %v1268
      %vm1276 = vcmp.eq.s32.totalorder %v1020, 5
      %1278 = vset.pattern.permute.xlu0 2
      %1279 = vperm.xlu0 %1278, %v1253
      %v1280 = vpop.permute.xlu0 %1279
      %v1282 = vsel %vm1276, %v1280, %v1275
      %vm1283 = vcmp.eq.s32.totalorder %v1020, 6
      %v1284 = vsel %vm1283, %v1255, %v1282
      %1285 = vst [vmem:[%s5] sm:$0x1] %v1284
    $region33: #{bengali_classifier_forward.1} parent=1 // pred_fallthru
      _
    // Predicated region
    $region34: #{bengali_classifier_forward.1} parent=1 // pred_check
      _
    $region35: #{bengali_classifier_forward.1} parent=1 // pred_check_branch
      %1287 = sbr.rel (0) target = $region37
    $region36: #{bengali_classifier_forward.1} parent=1 // pred_region
      %s1289 = ssub.s32 256, 256
      %1290 = vsyncadd [#allocation4], %s1289
      %s1292 = sshll.u32 [#allocation5], 4
      %s1293 = int_to_ptr.vmem [resolvable:$true] %s1292
      %1295 = dma.vmem_to_hbm [thread:$0]  %s1293, 256, %s4, [#allocation4]
    $region37: #{bengali_classifier_forward.1} parent=1 // pred_fallthru
      _
    // Predicated region
    $region38: #{bengali_classifier_forward.1} parent=1 // pred_check
      _
    $region39: #{bengali_classifier_forward.1} parent=1 // pred_check_branch
      %1297 = sbr.rel (0) target = $region41
    $region40: #{bengali_classifier_forward.1} parent=1 // pred_region
      _
    $region41: #{bengali_classifier_forward.1} parent=1 // pred_fallthru
      _
    // Predicated region
    $region42: #{bengali_classifier_forward.1} parent=1 // pred_check
      _
    $region43: #{bengali_classifier_forward.1} parent=1 // pred_check_branch
      %1299 = sbr.rel (0) target = $region45
    $region44: #{bengali_classifier_forward.1} parent=1 // pred_region
      %1300 = dma.done [#allocation4], 256
    $region45: #{bengali_classifier_forward.1} parent=1 // pred_fallthru
      _
    // Predicated region
    $region46: #{bengali_classifier_forward.1} parent=1 // pred_check
      _
    $region47: #{bengali_classifier_forward.1} parent=1 // pred_check_branch
      %1302 = sbr.rel (0) target = $region49
    $region48: #{bengali_classifier_forward.1} parent=1 // pred_region
      _
    $region49: #{bengali_classifier_forward.1} parent=1 // pred_fallthru
      _
    %1303 = vsyncpa [#allocation3], 1
    %1304 = vsyncpa [#allocation4], 1

</llo_original>
